<compile_context>
chip_gen: v6e
topology: v6e:2x2x1
jax: 0.10.0
libtpu: 0.0.40
codegen_flags: <defaults>
</compile_context>

<pallas_src>
import math

import jax
import jax.numpy as jnp
from jax.experimental import pallas as pl
from jax.experimental.pallas import tpu as pltpu


# ----------------------------------------------------------------------------
# Pallas kernel: fused 4-layer MLP (matmul + bias + ReLU hot path)
# ----------------------------------------------------------------------------
def _make_mlp_kernel(bf16_epilogue):
    def kernel(x_ref,
               w0_ref, b0_ref,
               w1_ref, b1_ref,
               w2_ref, b2_ref,
               w3_ref, b3_ref,
               o_ref):
        def hidden(h, w_ref, b_ref):
            # MXU: bf16 x bf16 -> f32 accumulate.
            acc = jnp.dot(h, w_ref[...], preferred_element_type=jnp.float32)
            if bf16_epilogue:
                # v6e/v7x: bias add + ReLU on the packed bf16 VALU (bias is bf16).
                return jnp.maximum(acc.astype(jnp.bfloat16) + b_ref[...], 0.0)
            # v5*: f32 epilogue, then carry bf16 between layers.
            return jnp.maximum(acc + b_ref[...], 0.0).astype(jnp.bfloat16)

        h = x_ref[...]                       # already bf16 from the wrapper
        # first_fc + first_activation (ReLU)
        h = hidden(h, w0_ref, b0_ref)
        # more_hidden: Linear + ReLU, Linear + ReLU
        h = hidden(h, w1_ref, b1_ref)
        h = hidden(h, w2_ref, b2_ref)
        # last_fc + last_activation (defaults to the same ReLU): f32 epilogue,
        # then cast once to the (bf16) output dtype for the lane-dense store.
        acc = jnp.dot(h, w3_ref[...], preferred_element_type=jnp.float32)
        o_ref[...] = jnp.maximum(acc + b3_ref[...], 0.0).astype(o_ref.dtype)

    return kernel


# ----------------------------------------------------------------------------
# Wrapper: padding, tiling, pallas_call
# ----------------------------------------------------------------------------
def _round_up(n, m):
    return (n + m - 1) // m * m


def _cdiv(a, b):
    return (a + b - 1) // b


def _device_kind():
    try:
        return jax.devices()[0].device_kind.lower()
    except Exception:
        return ""


def mlp_pallas(x, params, *, batch_tile=None):
    """x: (B, in_features). params: list of 4 (W, b) with W of shape (in, out)."""
    B, in_dim = x.shape
    out_dim = params[-1][0].shape[1]

    kind = _device_kind()
    n_tc = 2 if "v7" in kind else 1          # v7x: 2 TensorCores per chip
    bf16_epilogue = "v5" not in kind         # v5* has no packed bf16 VALU

    if batch_tile is None:
        batch_tile = 512                     # sweep-able; VMEM use is tiny

    # ---- batch tiling (generation-aware) ------------------------------------
    b_pad8 = _round_up(max(B, 1), 8)
    tile = _round_up(min(batch_tile, b_pad8), 8)
    steps = _cdiv(b_pad8, tile)
    if n_tc > 1:
        # v7x: keep both TensorCores busy -> even number of grid steps.
        if steps == 1 and b_pad8 >= 16:
            tile = _round_up(_cdiv(b_pad8, 2), 8)
            steps = _cdiv(b_pad8, tile)
        if steps > 1 and steps % 2 == 1:
            steps += 1
    B_pad = int(steps) * int(tile)

    # ---- parameter padding: out dims (and hidden in dims) to multiples of 128
    #      so every matmul / store is lane-dense.  Zero padding is exact.
    n_layers = len(params)
    hid_bias_dt = jnp.bfloat16 if bf16_epilogue else jnp.float32

    w_pads, b_pads = [], []
    for li, (w, b) in enumerate(params):
        r_in = w.shape[0] if li == 0 else _round_up(w.shape[0], 128)
        r_out = _round_up(w.shape[1], 128)
        wp = jnp.pad(w, ((0, r_in - w.shape[0]), (0, r_out - w.shape[1])))
        w_pads.append(wp.astype(jnp.bfloat16))
        bdt = hid_bias_dt if li < n_layers - 1 else jnp.float32
        bp = jnp.pad(b, (0, r_out - b.shape[0])).reshape(1, r_out).astype(bdt)
        b_pads.append(bp)
    w0p, w1p, w2p, w3p = w_pads
    b0p, b1p, b2p, b3p = b_pads
    out_pad = w3p.shape[1]

    # ---- input: bf16, no feature-dim padding, batch pad only if required ----
    x_bf16 = x.astype(jnp.bfloat16)
    if B_pad != B:
        x_bf16 = jnp.pad(x_bf16, ((0, B_pad - B), (0, 0)))

    # ---- cost estimate (padded shapes, bf16 streams) -------------------------
    flops = 2 * B_pad * sum(w.shape[0] * w.shape[1] for w in w_pads)
    bytes_accessed = (B_pad * in_dim * 2 + B_pad * out_pad * 2
                      + sum(w.size * 2 for w in w_pads)
                      + sum(b.size * b.dtype.itemsize for b in b_pads))
    cost = pl.CostEstimate(flops=int(flops), transcendentals=0,
                           bytes_accessed=int(bytes_accessed))

    full = lambda arr: pl.BlockSpec(arr.shape, lambda i: (0, 0))
    grid = (B_pad // tile,)

    out_padded = pl.pallas_call(
        _make_mlp_kernel(bf16_epilogue),
        out_shape=jax.ShapeDtypeStruct((B_pad, out_pad), jnp.bfloat16),
        grid_spec=pltpu.PrefetchScalarGridSpec(
            num_scalar_prefetch=0,
            grid=grid,
            in_specs=[
                # block's last dim == full array dim -> legal even if not %128
                pl.BlockSpec((tile, in_dim), lambda i: (i, 0)),
                full(w0p), full(b0p),
                full(w1p), full(b1p),
                full(w2p), full(b2p),
                full(w3p), full(b3p),
            ],
            out_specs=pl.BlockSpec((tile, out_pad), lambda i: (i, 0)),
        ),
        compiler_params=pltpu.CompilerParams(
            dimension_semantics=("parallel",),
        ),
        cost_estimate=cost,
    )(x_bf16, w0p, b0p, w1p, b1p, w2p, b2p, w3p, b3p)

    return out_padded[:B, :out_dim].astype(x.dtype)


# ----------------------------------------------------------------------------
# Deterministic parameter init (PyTorch nn.Linear-style uniform +-1/sqrt(fan_in))
# ----------------------------------------------------------------------------
def init_mlp_params(key, in_features, dims=(500, 300, 200, 150)):
    layer_dims = [(in_features, dims[0])]
    for i in range(1, len(dims) - 1):
        layer_dims.append((dims[i - 1], dims[i]))
    layer_dims.append((dims[-2], dims[-1]))

    params = []
    for (fan_in, fan_out) in layer_dims:
        key, kw, kb = jax.random.split(key, 3)
        bound = 1.0 / math.sqrt(fan_in)
        w = jax.random.uniform(kw, (fan_in, fan_out), jnp.float32, -bound, bound)
        b = jax.random.uniform(kb, (fan_out,), jnp.float32, -bound, bound)
        params.append((w, b))
    return params


# ----------------------------------------------------------------------------
# References
# ----------------------------------------------------------------------------
def mlp_reference_f32(x, params):
    h = x.astype(jnp.float32)
    for (w, b) in params:
        h = jnp.maximum(h @ w + b, 0.0)
    return h


def mlp_reference_matched(x, params, bf16_epilogue):
    """Mirrors the kernel's precision choices exactly (bf16 MXU, bf16 carries,
    generation-dependent hidden epilogue, bf16 output)."""
    h = x.astype(jnp.bfloat16)
    n = len(params)
    for li, (w, b) in enumerate(params):
        acc = jnp.dot(h, w.astype(jnp.bfloat16),
                      preferred_element_type=jnp.float32)
        if li < n - 1:
            if bf16_epilogue:
                h = jnp.maximum(acc.astype(jnp.bfloat16)
                                + b.astype(jnp.bfloat16), 0.0)
            else:
                h = jnp.maximum(acc + b, 0.0).astype(jnp.bfloat16)
        else:
            h = jnp.maximum(acc + b, 0.0).astype(jnp.bfloat16)
    return h.astype(jnp.float32)


if __name__ == "__main__":
    key = jax.random.PRNGKey(0)
    kx, kp = jax.random.split(key)

    batch = 8
    in_features = 64
    dims = (500, 300, 200, 150)

    x = jax.random.normal(kx, (batch, in_features), jnp.float32)
    params = init_mlp_params(kp, in_features, dims)

    out = mlp_pallas(x, params)
    out = jax.block_until_ready(out)

    assert out.shape == (batch, dims[-1])

    bf16_epi = "v5" not in _device_kind()
    ref_match = mlp_reference_matched(x, params, bf16_epi)
    ref_f32 = mlp_reference_f32(x, params)
    assert jnp.allclose(out.astype(jnp.float32), ref_match,
                        atol=3e-2, rtol=3e-2), "mismatch vs precision-matched reference"
    assert jnp.allclose(out.astype(jnp.float32), ref_f32,
                        atol=2e-1, rtol=2e-1), "mismatch vs f32 reference"

    print("KERNEL_OK")
</pallas_src>

<mosaic_0001>
module attributes {stable_mosaic.version = 11 : i64} {
  func.func @kernel(%arg0: i32, %arg1: memref<8x64xbf16, #tpu.memory_space<vmem>>, %arg2: memref<64x512xbf16, #tpu.memory_space<vmem>>, %arg3: memref<1x512xbf16, #tpu.memory_space<vmem>>, %arg4: memref<512x384xbf16, #tpu.memory_space<vmem>>, %arg5: memref<1x384xbf16, #tpu.memory_space<vmem>>, %arg6: memref<384x256xbf16, #tpu.memory_space<vmem>>, %arg7: memref<1x256xbf16, #tpu.memory_space<vmem>>, %arg8: memref<256x256xbf16, #tpu.memory_space<vmem>>, %arg9: memref<1x256xf32, #tpu.memory_space<vmem>>, %arg10: memref<8x256xbf16, #tpu.memory_space<vmem>>) attributes {dimension_semantics = [#tpu.dimension_semantics<parallel>], iteration_bounds = array<i64: 1>, scalar_prefetch = 0 : i64, scratch_operands = 0 : i64, tpu.core_type = #tpu.core_type<tc>, window_params = [{transform_indices = @transform_0, window_bounds = array<i64: 8, 64>}, {pipeline_mode = #tpu.pipeline_mode<synchronous>, transform_indices = @transform_1, window_bounds = array<i64: 64, 512>}, {pipeline_mode = #tpu.pipeline_mode<synchronous>, transform_indices = @transform_2, window_bounds = array<i64: 1, 512>}, {pipeline_mode = #tpu.pipeline_mode<synchronous>, transform_indices = @transform_3, window_bounds = array<i64: 512, 384>}, {pipeline_mode = #tpu.pipeline_mode<synchronous>, transform_indices = @transform_4, window_bounds = array<i64: 1, 384>}, {pipeline_mode = #tpu.pipeline_mode<synchronous>, transform_indices = @transform_5, window_bounds = array<i64: 384, 256>}, {pipeline_mode = #tpu.pipeline_mode<synchronous>, transform_indices = @transform_6, window_bounds = array<i64: 1, 256>}, {pipeline_mode = #tpu.pipeline_mode<synchronous>, transform_indices = @transform_7, window_bounds = array<i64: 256, 256>}, {pipeline_mode = #tpu.pipeline_mode<synchronous>, transform_indices = @transform_8, window_bounds = array<i64: 1, 256>}, {transform_indices = @transform_9, window_bounds = array<i64: 8, 256>}]} {
    %c0 = arith.constant 0 : index
    %c0_0 = arith.constant 0 : index
    %0 = vector.load %arg1[%c0, %c0_0] : memref<8x64xbf16, #tpu.memory_space<vmem>>, vector<8x64xbf16>
    %c0_1 = arith.constant 0 : index
    %c0_2 = arith.constant 0 : index
    %1 = vector.load %arg2[%c0_1, %c0_2] : memref<64x512xbf16, #tpu.memory_space<vmem>>, vector<64x512xbf16>
    %cst = arith.constant dense<0.000000e+00> : vector<8x512xf32>
    %2 = tpu.matmul %0, %1, %cst {dimension_numbers = #tpu.dot_dimension_numbers<[1], [0], [0], [1], [0, 0, 1, 1], [], []>} : vector<8x64xbf16>, vector<64x512xbf16>, vector<8x512xf32> -> vector<8x512xf32>
    %3 = arith.truncf %2 : vector<8x512xf32> to vector<8x512xbf16>
    %c0_3 = arith.constant 0 : index
    %c0_4 = arith.constant 0 : index
    %4 = vector.load %arg3[%c0_3, %c0_4] : memref<1x512xbf16, #tpu.memory_space<vmem>>, vector<1x512xbf16>
    %5 = vector.broadcast %4 : vector<1x512xbf16> to vector<8x512xbf16>
    %6 = arith.addf %3, %5 : vector<8x512xbf16>
    %cst_5 = arith.constant 0.000000e+00 : bf16
    %7 = vector.broadcast %cst_5 : bf16 to vector<8x512xbf16>
    %8 = arith.maximumf %6, %7 : vector<8x512xbf16>
    %c0_6 = arith.constant 0 : index
    %c0_7 = arith.constant 0 : index
    %9 = vector.load %arg4[%c0_6, %c0_7] : memref<512x384xbf16, #tpu.memory_space<vmem>>, vector<512x384xbf16>
    %cst_8 = arith.constant dense<0.000000e+00> : vector<8x384xf32>
    %10 = tpu.matmul %8, %9, %cst_8 {dimension_numbers = #tpu.dot_dimension_numbers<[1], [0], [0], [1], [0, 0, 1, 1], [], []>} : vector<8x512xbf16>, vector<512x384xbf16>, vector<8x384xf32> -> vector<8x384xf32>
    %11 = arith.truncf %10 : vector<8x384xf32> to vector<8x384xbf16>
    %c0_9 = arith.constant 0 : index
    %c0_10 = arith.constant 0 : index
    %12 = vector.load %arg5[%c0_9, %c0_10] : memref<1x384xbf16, #tpu.memory_space<vmem>>, vector<1x384xbf16>
    %13 = vector.broadcast %12 : vector<1x384xbf16> to vector<8x384xbf16>
    %14 = arith.addf %11, %13 : vector<8x384xbf16>
    %cst_11 = arith.constant 0.000000e+00 : bf16
    %15 = vector.broadcast %cst_11 : bf16 to vector<8x384xbf16>
    %16 = arith.maximumf %14, %15 : vector<8x384xbf16>
    %c0_12 = arith.constant 0 : index
    %c0_13 = arith.constant 0 : index
    %17 = vector.load %arg6[%c0_12, %c0_13] : memref<384x256xbf16, #tpu.memory_space<vmem>>, vector<384x256xbf16>
    %cst_14 = arith.constant dense<0.000000e+00> : vector<8x256xf32>
    %18 = tpu.matmul %16, %17, %cst_14 {dimension_numbers = #tpu.dot_dimension_numbers<[1], [0], [0], [1], [0, 0, 1, 1], [], []>} : vector<8x384xbf16>, vector<384x256xbf16>, vector<8x256xf32> -> vector<8x256xf32>
    %19 = arith.truncf %18 : vector<8x256xf32> to vector<8x256xbf16>
    %c0_15 = arith.constant 0 : index
    %c0_16 = arith.constant 0 : index
    %20 = vector.load %arg7[%c0_15, %c0_16] : memref<1x256xbf16, #tpu.memory_space<vmem>>, vector<1x256xbf16>
    %21 = vector.broadcast %20 : vector<1x256xbf16> to vector<8x256xbf16>
    %22 = arith.addf %19, %21 : vector<8x256xbf16>
    %cst_17 = arith.constant 0.000000e+00 : bf16
    %23 = vector.broadcast %cst_17 : bf16 to vector<8x256xbf16>
    %24 = arith.maximumf %22, %23 : vector<8x256xbf16>
    %c0_18 = arith.constant 0 : index
    %c0_19 = arith.constant 0 : index
    %25 = vector.load %arg8[%c0_18, %c0_19] : memref<256x256xbf16, #tpu.memory_space<vmem>>, vector<256x256xbf16>
    %cst_20 = arith.constant dense<0.000000e+00> : vector<8x256xf32>
    %26 = tpu.matmul %24, %25, %cst_20 {dimension_numbers = #tpu.dot_dimension_numbers<[1], [0], [0], [1], [0, 0, 1, 1], [], []>} : vector<8x256xbf16>, vector<256x256xbf16>, vector<8x256xf32> -> vector<8x256xf32>
    %c0_21 = arith.constant 0 : index
    %c0_22 = arith.constant 0 : index
    %27 = vector.load %arg9[%c0_21, %c0_22] : memref<1x256xf32, #tpu.memory_space<vmem>>, vector<1x256xf32>
    %28 = vector.broadcast %27 : vector<1x256xf32> to vector<8x256xf32>
    %29 = arith.addf %26, %28 : vector<8x256xf32>
    %cst_23 = arith.constant 0.000000e+00 : f32
    %30 = vector.broadcast %cst_23 : f32 to vector<8x256xf32>
    %31 = arith.maximumf %29, %30 : vector<8x256xf32>
    %32 = arith.truncf %31 : vector<8x256xf32> to vector<8x256xbf16>
    %c0_24 = arith.constant 0 : index
    %c0_25 = arith.constant 0 : index
    %33 = vector.load %arg10[%c0_24, %c0_25] : memref<8x256xbf16, #tpu.memory_space<vmem>>, vector<8x256xbf16>
    tpu.vector_store %arg10[%c0_24, %c0_25], %32 {strides = array<i32>} : memref<8x256xbf16, #tpu.memory_space<vmem>>, vector<8x256xbf16>,
    return
  }
  func.func @transform_0(%arg0: i32) -> (i32, i32) {
    %c0_i32 = arith.constant 0 : i32
    %c0_i32_0 = arith.constant 0 : i32
    return %arg0, %c0_i32 : i32, i32
  }
  func.func @transform_1(%arg0: i32) -> (i32, i32) {
    %c0_i32 = arith.constant 0 : i32
    %c0_i32_0 = arith.constant 0 : i32
    %c0_i32_1 = arith.constant 0 : i32
    return %c0_i32, %c0_i32_0 : i32, i32
  }
  func.func @transform_2(%arg0: i32) -> (i32, i32) {
    %c0_i32 = arith.constant 0 : i32
    %c0_i32_0 = arith.constant 0 : i32
    %c0_i32_1 = arith.constant 0 : i32
    return %c0_i32, %c0_i32_0 : i32, i32
  }
  func.func @transform_3(%arg0: i32) -> (i32, i32) {
    %c0_i32 = arith.constant 0 : i32
    %c0_i32_0 = arith.constant 0 : i32
    %c0_i32_1 = arith.constant 0 : i32
    return %c0_i32, %c0_i32_0 : i32, i32
  }
  func.func @transform_4(%arg0: i32) -> (i32, i32) {
    %c0_i32 = arith.constant 0 : i32
    %c0_i32_0 = arith.constant 0 : i32
    %c0_i32_1 = arith.constant 0 : i32
    return %c0_i32, %c0_i32_0 : i32, i32
  }
  func.func @transform_5(%arg0: i32) -> (i32, i32) {
    %c0_i32 = arith.constant 0 : i32
    %c0_i32_0 = arith.constant 0 : i32
    %c0_i32_1 = arith.constant 0 : i32
    return %c0_i32, %c0_i32_0 : i32, i32
  }
  func.func @transform_6(%arg0: i32) -> (i32, i32) {
    %c0_i32 = arith.constant 0 : i32
    %c0_i32_0 = arith.constant 0 : i32
    %c0_i32_1 = arith.constant 0 : i32
    return %c0_i32, %c0_i32_0 : i32, i32
  }
  func.func @transform_7(%arg0: i32) -> (i32, i32) {
    %c0_i32 = arith.constant 0 : i32
    %c0_i32_0 = arith.constant 0 : i32
    %c0_i32_1 = arith.constant 0 : i32
    return %c0_i32, %c0_i32_0 : i32, i32
  }
  func.func @transform_8(%arg0: i32) -> (i32, i32) {
    %c0_i32 = arith.constant 0 : i32
    %c0_i32_0 = arith.constant 0 : i32
    %c0_i32_1 = arith.constant 0 : i32
    return %c0_i32, %c0_i32_0 : i32, i32
  }
  func.func @transform_9(%arg0: i32) -> (i32, i32) {
    %c0_i32 = arith.constant 0 : i32
    %c0_i32_0 = arith.constant 0 : i32
    return %arg0, %c0_i32 : i32, i32
  }
}

</mosaic_0001>

<llo_original>
// kernel: tpu_custom_call.1
$region0: #{tpu_custom_call.1}
  #allocation0 [shape = 'u32[]', space=smem, size = 0x4, offset = 0x4, fixed_abs, tag = 'smem constant byte address 0x4 - core index']
  #allocation1 [shape = 'u32[144,128]{1,0:T(1,128)}', space=vmem, size = 0x12000, scoped, tag = 'internal scratch']
  %s0 = inlined_call_operand.hbm [shape: bf16[8,64], index: 0, kind: input, shape index: {}]
  %s1 = inlined_call_operand.hbm [shape: bf16[64,512], index: 1, kind: input, shape index: {}]
  %s2 = inlined_call_operand.hbm [shape: bf16[1,512], index: 2, kind: input, shape index: {}]
  %s3 = inlined_call_operand.hbm [shape: bf16[512,384], index: 3, kind: input, shape index: {}]
  %s4 = inlined_call_operand.vmem [shape: bf16[1,384], index: 4, kind: input, shape index: {}]
  %s5 = inlined_call_operand.hbm [shape: bf16[384,256], index: 5, kind: input, shape index: {}]
  %s6 = inlined_call_operand.vmem [shape: bf16[1,256], index: 6, kind: input, shape index: {}]
  %s7 = inlined_call_operand.hbm [shape: bf16[256,256], index: 7, kind: input, shape index: {}]
  %s8 = inlined_call_operand.vmem [shape: f32[1,256], index: 8, kind: input, shape index: {}]
  %s9 = inlined_call_operand.hbm [shape: bf16[8,256], index: 9, kind: output, shape index: {}]
  %s10 = sld [smem:[#allocation0]]
  $region70: #{tpu_custom_call.1} parent=0
    _
  %s12 = ssub.s32 1, %s10
  %s13 = scalar_select 0, %s12, %s10
  $region1: #{tpu_custom_call.1} parent=0
    #allocation2 [shape = 'u8[2048]{0}', space=vmem, size = 0x800, scoped, tag = 'input window, operand 0, single buffered']
    #allocation3 [shape = 's32[1]{0}', space=sflag, size = 0x4, scoped, tag = 'scoped memory for tpu_custom_call.1']
    #allocation4 [shape = 's32[1]{0}', space=sflag, size = 0x4, scoped, tag = 'scoped memory for tpu_custom_call.1']
    #allocation5 [shape = 'u8[65536]{0}', space=vmem, size = 0x10000, scoped, tag = 'input window, operand 1, single buffered']
    #allocation6 [shape = 's32[1]{0}', space=sflag, size = 0x4, scoped, tag = 'scoped memory for tpu_custom_call.1']
    #allocation7 [shape = 'u8[2048]{0}', space=vmem, size = 0x800, scoped, tag = 'input window, operand 2, single buffered']
    #allocation8 [shape = 'u8[393216]{0}', space=vmem, size = 0x60000, scoped, tag = 'input window, operand 3, single buffered']
    #allocation9 [shape = 's32[1]{0}', space=sflag, size = 0x4, scoped, tag = 'scoped memory for tpu_custom_call.1']
    #allocation10 [shape = 'u8[196608]{0}', space=vmem, size = 0x30000, scoped, tag = 'input window, operand 5, single buffered']
    #allocation11 [shape = 'u8[131072]{0}', space=vmem, size = 0x20000, scoped, tag = 'input window, operand 7, single buffered']
    #allocation12 [shape = 's32[1]{0}', space=sflag, size = 0x4, scoped, tag = 'scoped memory for tpu_custom_call.1']
    #allocation13 [shape = 'u8[4096]{0}', space=vmem, size = 0x1000, scoped, tag = 'output window, operand 0, single buffered']
    %14 = vsyncpa [#allocation3], 0
    %15 = vsyncpa [#allocation6], 0
    %16 = vsyncpa [#allocation9], 0
    %17 = vsyncpa [#allocation12], 0
    %18 = vsyncpa [#allocation4], 0
    // Predicated region
    $region2: #{tpu_custom_call.1} parent=1 // pred_check
      _
    $region3: #{tpu_custom_call.1} parent=1 // pred_check_branch
      %20 = sbr.rel (0) target = $region5
    $region4: #{tpu_custom_call.1} parent=1 // pred_region
      %s22 = ssub.s32 64, 64
      %23 = vsyncadd [#allocation3], %s22
      %s25 = sshll.u32 [#allocation2], 4
      %s26 = int_to_ptr.vmem [resolvable:$true] %s25
      %28 = dma.hbm_to_vmem [thread:$0]  %s0, 64, %s26, [#allocation3]
    $region5: #{tpu_custom_call.1} parent=1 // pred_fallthru
      _
    // Predicated region
    $region6: #{tpu_custom_call.1} parent=1 // pred_check
      _
    $region7: #{tpu_custom_call.1} parent=1 // pred_check_branch
      %30 = sbr.rel (0) target = $region9
    $region8: #{tpu_custom_call.1} parent=1 // pred_region
      %s32 = ssub.s32 2048, 2048
      %33 = vsyncadd [#allocation6], %s32
      %s34 = sshll.u32 [#allocation5], 4
      %s35 = int_to_ptr.vmem [resolvable:$true] %s34
      %40 = dma.hbm_to_vmem [thread:$0]  %s1, 2048, %s35, [#allocation6], 256, 256, 16
    $region9: #{tpu_custom_call.1} parent=1 // pred_fallthru
      _
    // Predicated region
    $region10: #{tpu_custom_call.1} parent=1 // pred_check
      _
    $region11: #{tpu_custom_call.1} parent=1 // pred_check_branch
      %42 = sbr.rel (0) target = $region13
    $region12: #{tpu_custom_call.1} parent=1 // pred_region
      %s44 = ssub.s32 64, 64
      %45 = vsyncadd [#allocation6], %s44
      %s47 = sshll.u32 [#allocation7], 4
      %s48 = int_to_ptr.vmem [resolvable:$true] %s47
      %50 = dma.hbm_to_vmem [thread:$0]  %s2, 64, %s48, [#allocation6]
    $region13: #{tpu_custom_call.1} parent=1 // pred_fallthru
      _
    // Predicated region
    $region14: #{tpu_custom_call.1} parent=1 // pred_check
      _
    $region15: #{tpu_custom_call.1} parent=1 // pred_check_branch
      %52 = sbr.rel (0) target = $region17
    $region16: #{tpu_custom_call.1} parent=1 // pred_region
      %s54 = ssub.s32 12288, 12288
      %55 = vsyncadd [#allocation9], %s54
      %s56 = sshll.u32 [#allocation8], 4
      %s57 = int_to_ptr.vmem [resolvable:$true] %s56
      %62 = dma.hbm_to_vmem [thread:$0]  %s3, 12288, %s57, [#allocation9], 192, 192, 12
    $region17: #{tpu_custom_call.1} parent=1 // pred_fallthru
      _
    // Predicated region
    $region18: #{tpu_custom_call.1} parent=1 // pred_check
      _
    $region19: #{tpu_custom_call.1} parent=1 // pred_check_branch
      %64 = sbr.rel (0) target = $region21
    $region20: #{tpu_custom_call.1} parent=1 // pred_region
      _
    $region21: #{tpu_custom_call.1} parent=1 // pred_fallthru
      _
    // Predicated region
    $region22: #{tpu_custom_call.1} parent=1 // pred_check
      _
    $region23: #{tpu_custom_call.1} parent=1 // pred_check_branch
      %66 = sbr.rel (0) target = $region25
    $region24: #{tpu_custom_call.1} parent=1 // pred_region
      %s68 = ssub.s32 6144, 6144
      %69 = vsyncadd [#allocation9], %s68
      %s70 = sshll.u32 [#allocation10], 4
      %s71 = int_to_ptr.vmem [resolvable:$true] %s70
      %76 = dma.hbm_to_vmem [thread:$0]  %s5, 6144, %s71, [#allocation9], 128, 128, 8
    $region25: #{tpu_custom_call.1} parent=1 // pred_fallthru
      _
    // Predicated region
    $region26: #{tpu_custom_call.1} parent=1 // pred_check
      _
    $region27: #{tpu_custom_call.1} parent=1 // pred_check_branch
      %78 = sbr.rel (0) target = $region29
    $region28: #{tpu_custom_call.1} parent=1 // pred_region
      _
    $region29: #{tpu_custom_call.1} parent=1 // pred_fallthru
      _
    // Predicated region
    $region30: #{tpu_custom_call.1} parent=1 // pred_check
      _
    $region31: #{tpu_custom_call.1} parent=1 // pred_check_branch
      %80 = sbr.rel (0) target = $region33
    $region32: #{tpu_custom_call.1} parent=1 // pred_region
      %s82 = ssub.s32 4096, 4096
      %83 = vsyncadd [#allocation12], %s82
      %s84 = sshll.u32 [#allocation11], 4
      %s85 = int_to_ptr.vmem [resolvable:$true] %s84
      %90 = dma.hbm_to_vmem [thread:$0]  %s7, 4096, %s85, [#allocation12], 128, 128, 8
    $region33: #{tpu_custom_call.1} parent=1 // pred_fallthru
      _
    // Predicated region
    $region34: #{tpu_custom_call.1} parent=1 // pred_check
      _
    $region35: #{tpu_custom_call.1} parent=1 // pred_check_branch
      %92 = sbr.rel (0) target = $region37
    $region36: #{tpu_custom_call.1} parent=1 // pred_region
      _
    $region37: #{tpu_custom_call.1} parent=1 // pred_fallthru
      _
    // Predicated region
    $region38: #{tpu_custom_call.1} parent=1 // pred_check
      _
    $region39: #{tpu_custom_call.1} parent=1 // pred_check_branch
      %94 = sbr.rel (0) target = $region41
    $region40: #{tpu_custom_call.1} parent=1 // pred_region
      %95 = dma.done [#allocation3], 64
    $region41: #{tpu_custom_call.1} parent=1 // pred_fallthru
      _
    // Predicated region
    $region42: #{tpu_custom_call.1} parent=1 // pred_check
      _
    $region43: #{tpu_custom_call.1} parent=1 // pred_check_branch
      %97 = sbr.rel (0) target = $region45
    $region44: #{tpu_custom_call.1} parent=1 // pred_region
      %98 = dma.done [#allocation6], 2048
    $region45: #{tpu_custom_call.1} parent=1 // pred_fallthru
      _
    // Predicated region
    $region46: #{tpu_custom_call.1} parent=1 // pred_check
      _
    $region47: #{tpu_custom_call.1} parent=1 // pred_check_branch
      %100 = sbr.rel (0) target = $region49
    $region48: #{tpu_custom_call.1} parent=1 // pred_region
      %101 = dma.done [#allocation6], 64
    $region49: #{tpu_custom_call.1} parent=1 // pred_fallthru
      _
    // Predicated region
    $region50: #{tpu_custom_call.1} parent=1 // pred_check
      _
    $region51: #{tpu_custom_call.1} parent=1 // pred_check_branch
      %103 = sbr.rel (0) target = $region53
    $region52: #{tpu_custom_call.1} parent=1 // pred_region
      %104 = dma.done [#allocation9], 12288
    $region53: #{tpu_custom_call.1} parent=1 // pred_fallthru
      _
    // Predicated region
    $region54: #{tpu_custom_call.1} parent=1 // pred_check
      _
    $region55: #{tpu_custom_call.1} parent=1 // pred_check_branch
      %106 = sbr.rel (0) target = $region57
    $region56: #{tpu_custom_call.1} parent=1 // pred_region
      %107 = dma.done [#allocation9], 6144
    $region57: #{tpu_custom_call.1} parent=1 // pred_fallthru
      _
    // Predicated region
    $region58: #{tpu_custom_call.1} parent=1 // pred_check
      _
    $region59: #{tpu_custom_call.1} parent=1 // pred_check_branch
      %109 = sbr.rel (0) target = $region61
    $region60: #{tpu_custom_call.1} parent=1 // pred_region
      %110 = dma.done [#allocation12], 4096
    $region61: #{tpu_custom_call.1} parent=1 // pred_fallthru
      _
    %v112 = vld [vmem:[#allocation2] sm:$0xf]
    %v113 = vld [vmem:[#allocation5] sm:$0xff]
    %v114 = vld [vmem:[#allocation5 + $0x8] sm:$0xff]
    %v115 = vld [vmem:[#allocation5 + $0x10] sm:$0xff]
    %v116 = vld [vmem:[#allocation5 + $0x18] sm:$0xff]
    %v117 = vld [vmem:[#allocation5 + $0x20] sm:$0xff]
    %v118 = vld [vmem:[#allocation5 + $0x28] sm:$0xff]
    %v119 = vld [vmem:[#allocation5 + $0x30] sm:$0xff]
    %v120 = vld [vmem:[#allocation5 + $0x38] sm:$0xff]
    %v121 = vld [vmem:[#allocation5 + $0x40] sm:$0xff]
    %v122 = vld [vmem:[#allocation5 + $0x48] sm:$0xff]
    %v123 = vld [vmem:[#allocation5 + $0x50] sm:$0xff]
    %v124 = vld [vmem:[#allocation5 + $0x58] sm:$0xff]
    %v125 = vld [vmem:[#allocation5 + $0x60] sm:$0xff]
    %v126 = vld [vmem:[#allocation5 + $0x68] sm:$0xff]
    %v127 = vld [vmem:[#allocation5 + $0x70] sm:$0xff]
    %v128 = vld [vmem:[#allocation5 + $0x78] sm:$0xff]
    %v145 = vunpack.c.l.b16 %v113
    %v146 = vunpack.c.h.b16 %v113
    %v147 = vunpack.c.l.b16 %v114
    %v148 = vunpack.c.h.b16 %v114
    %v149 = vunpack.c.l.b16 %v115
    %v150 = vunpack.c.h.b16 %v115
    %v151 = vunpack.c.l.b16 %v116
    %v152 = vunpack.c.h.b16 %v116
    %v153 = vunpack.c.l.b16 %v117
    %v154 = vunpack.c.h.b16 %v117
    %v155 = vunpack.c.l.b16 %v118
    %v156 = vunpack.c.h.b16 %v118
    %v157 = vunpack.c.l.b16 %v119
    %v158 = vunpack.c.h.b16 %v119
    %v159 = vunpack.c.l.b16 %v120
    %v160 = vunpack.c.h.b16 %v120
    %v161 = vunpack.c.l.b16 %v121
    %v162 = vunpack.c.h.b16 %v121
    %v163 = vunpack.c.l.b16 %v122
    %v164 = vunpack.c.h.b16 %v122
    %v165 = vunpack.c.l.b16 %v123
    %v166 = vunpack.c.h.b16 %v123
    %v167 = vunpack.c.l.b16 %v124
    %v168 = vunpack.c.h.b16 %v124
    %v169 = vunpack.c.l.b16 %v125
    %v170 = vunpack.c.h.b16 %v125
    %v171 = vunpack.c.l.b16 %v126
    %v172 = vunpack.c.h.b16 %v126
    %v173 = vunpack.c.l.b16 %v127
    %v174 = vunpack.c.h.b16 %v127
    %v175 = vunpack.c.l.b16 %v128
    %v176 = vunpack.c.h.b16 %v128
    %v177 = vpack.c.b16 %v149, %v145
    %v178 = vpack.c.b16 %v150, %v146
    %v179 = vpack.c.b16 %v151, %v147
    %v180 = vpack.c.b16 %v152, %v148
    %v181 = vpack.c.b16 %v157, %v153
    %v182 = vpack.c.b16 %v158, %v154
    %v183 = vpack.c.b16 %v159, %v155
    %v184 = vpack.c.b16 %v160, %v156
    %v185 = vpack.c.b16 %v165, %v161
    %v186 = vpack.c.b16 %v166, %v162
    %v187 = vpack.c.b16 %v167, %v163
    %v188 = vpack.c.b16 %v168, %v164
    %v189 = vpack.c.b16 %v173, %v169
    %v190 = vpack.c.b16 %v174, %v170
    %v191 = vpack.c.b16 %v175, %v171
    %v192 = vpack.c.b16 %v176, %v172
    %vm209 = vcmask 523264
    %v211 = vsel %vm209, %v112, 0
    %213 = vmatprep.subr.bf16.mxu0 0
    %214 = vmatpush1.bf16.msra.mxu0 0
    %215 = vmatprep.subr.bf16.mxu0 0
    %216 = vmatpush1.bf16.msra.mxu0 0
    %217 = vmatprep.subr.bf16.mxu0 0
    %218 = vmatpush1.bf16.msra.mxu0 0
    %219 = vmatprep.subr.bf16.mxu0 0
    %220 = vmatpush1.bf16.msra.mxu0 0
    %221 = vmatprep.subr.bf16.mxu0 %v190
    %222 = vmatpush1.bf16.msra.mxu0 %v189
    %223 = vmatprep.subr.bf16.mxu0 %v186
    %224 = vmatpush1.bf16.msra.mxu0 %v185
    %225 = vmatprep.subr.bf16.mxu0 %v182
    %226 = vmatpush1.bf16.msra.mxu0 %v181
    %227 = vmatprep.subr.bf16.mxu0 %v178
    %228 = vmatpush1.bf16.msra.mxu0 %v177
    %229 = vmatprep.subr.bf16.mxu0 0
    %230 = vmatpush2.bf16.msra.mxu0 0
    %231 = vmatprep.subr.bf16.mxu0 0
    %232 = vmatpush2.bf16.msra.mxu0 0
    %233 = vmatprep.subr.bf16.mxu0 0
    %234 = vmatpush2.bf16.msra.mxu0 0
    %235 = vmatprep.subr.bf16.mxu0 0
    %236 = vmatpush2.bf16.msra.mxu0 0
    %237 = vmatprep.subr.bf16.mxu0 0
    %238 = vmatpush2.bf16.msra.mxu0 0
    %239 = vmatprep.subr.bf16.mxu0 0
    %240 = vmatpush2.bf16.msra.mxu0 0
    %241 = vmatprep.subr.bf16.mxu0 0
    %242 = vmatpush2.bf16.msra.mxu0 0
    %243 = vmatprep.subr.bf16.mxu0 0
    %244 = vmatpush2.bf16.msra.mxu0 0
    %245 = vmatprep.mubr.bf16.mxu0 0
    %246 = vmatmul.mubr.bf16.gmra.mxu0 %v211
    %v247 = vpop.f32.mrf.mxu0
    %v248 = vadd.f32 0.0, %v247
    %v249 = vpop.f32.mrf.mxu0
    %v250 = vadd.f32 0.0, %v249
    %v251 = vpop.f32.mrf.mxu0
    %v252 = vpop.f32.mrf.mxu0
    %253 = vdwg.mxu0
    %254 = vmatprep.subr.bf16.mxu0 0
    %255 = vmatpush1.bf16.msra.mxu0 0
    %256 = vmatprep.subr.bf16.mxu0 0
    %257 = vmatpush1.bf16.msra.mxu0 0
    %258 = vmatprep.subr.bf16.mxu0 0
    %259 = vmatpush1.bf16.msra.mxu0 0
    %260 = vmatprep.subr.bf16.mxu0 0
    %261 = vmatpush1.bf16.msra.mxu0 0
    %262 = vmatprep.subr.bf16.mxu0 %v192
    %263 = vmatpush1.bf16.msra.mxu0 %v191
    %264 = vmatprep.subr.bf16.mxu0 %v188
    %265 = vmatpush1.bf16.msra.mxu0 %v187
    %266 = vmatprep.subr.bf16.mxu0 %v184
    %267 = vmatpush1.bf16.msra.mxu0 %v183
    %268 = vmatprep.subr.bf16.mxu0 %v180
    %269 = vmatpush1.bf16.msra.mxu0 %v179
    %270 = vmatprep.subr.bf16.mxu0 0
    %271 = vmatpush2.bf16.msra.mxu0 0
    %272 = vmatprep.subr.bf16.mxu0 0
    %273 = vmatpush2.bf16.msra.mxu0 0
    %274 = vmatprep.subr.bf16.mxu0 0
    %275 = vmatpush2.bf16.msra.mxu0 0
    %276 = vmatprep.subr.bf16.mxu0 0
    %277 = vmatpush2.bf16.msra.mxu0 0
    %278 = vmatprep.subr.bf16.mxu0 0
    %279 = vmatpush2.bf16.msra.mxu0 0
    %280 = vmatprep.subr.bf16.mxu0 0
    %281 = vmatpush2.bf16.msra.mxu0 0
    %282 = vmatprep.subr.bf16.mxu0 0
    %283 = vmatpush2.bf16.msra.mxu0 0
    %284 = vmatprep.subr.bf16.mxu0 0
    %285 = vmatpush2.bf16.msra.mxu0 0
    %286 = vmatprep.mubr.bf16.mxu0 0
    %287 = vmatmul.mubr.bf16.gmra.mxu0 %v211
    %v288 = vpop.f32.mrf.mxu0
    %v289 = vadd.f32 0.0, %v288
    %v290 = vpop.f32.mrf.mxu0
    %v291 = vadd.f32 0.0, %v290
    %v292 = vpop.f32.mrf.mxu0
    %v293 = vpop.f32.mrf.mxu0
    %294 = vdwg.mxu0
    %v295 = vpack.c.bf16 %v248, %v248
    %v296 = vpack.c.bf16 %v250, %v250
    %v297 = vpack.c.bf16 %v289, %v289
    %v298 = vpack.c.bf16 %v291, %v291
    %v299 = vld [vmem:[#allocation7] sm:$0xf]
    %v302 = vunpack.c.l.s4 1966171168
    %v303 = vunpack.c.0.s8 %v302
    %v304 = vlaneseq
    %v305 = vshrl.u32 %v304, 7
    %v306 = vsub.s32 %v303, %v305
    %v307 = vrot.slane %v299, %v306
    %v308 = vcombine.high %v307, %v307
    %v310 = vunpack.c.l.s4 1966171168
    %v311 = vunpack.c.0.s8 %v310
    %v312 = vlaneseq
    %v313 = vshrl.u32 %v312, 7
    %v314 = vsub.s32 %v311, %v313
    %v315 = vrot.slane %v307, %v314
    %v317 = vunpack.c.l.s4 1966171168
    %v318 = vunpack.c.0.s8 %v317
    %v319 = vlaneseq
    %v320 = vshrl.u32 %v319, 7
    %v321 = vsub.s32 %v318, %v320
    %v322 = vrot.slane %v308, %v321
    %v323 = vcombine.high %v315, %v315
    %v324 = vcombine.high %v322, %v322
    %v326 = vpack.i.b16 %v315, %v315
    %v328 = vlaneseq
    %v329 = vshrl.u32 %v328, 7
    %v330 = vsub.s32 0, %v329
    %v331 = vrot.slane %v326, %v330
    %v333 = vpack.i.b16 %v322, %v322
    %v335 = vlaneseq
    %v336 = vshrl.u32 %v335, 7
    %v337 = vsub.s32 0, %v336
    %v338 = vrot.slane %v333, %v337
    %v340 = vpack.i.b16 %v323, %v323
    %v342 = vlaneseq
    %v343 = vshrl.u32 %v342, 7
    %v344 = vsub.s32 0, %v343
    %v345 = vrot.slane %v340, %v344
    %v347 = vpack.i.b16 %v324, %v324
    %v349 = vlaneseq
    %v350 = vshrl.u32 %v349, 7
    %v351 = vsub.s32 0, %v350
    %v352 = vrot.slane %v347, %v351
    %v353 = vadd.bf16 %v295, %v331
    %v354 = vadd.bf16 %v296, %v338
    %v355 = vadd.bf16 %v297, %v345
    %v356 = vadd.bf16 %v298, %v352
    %v357 = vmax.bf16 %v353, 0
    %v358 = vmax.bf16 %v354, 0
    %v359 = vmax.bf16 %v355, 0
    %v360 = vmax.bf16 %v356, 0
    %v361 = vld [vmem:[#allocation8] sm:$0xff]
    %v362 = vld [vmem:[#allocation8 + $0x8] sm:$0xf]
    %v363 = vld [vmem:[#allocation8 + $0xc] sm:$0xff]
    %v364 = vld [vmem:[#allocation8 + $0x14] sm:$0xf]
    %v365 = vld [vmem:[#allocation8 + $0x18] sm:$0xff]
    %v366 = vld [vmem:[#allocation8 + $0x20] sm:$0xf]
    %v367 = vld [vmem:[#allocation8 + $0x24] sm:$0xff]
    %v368 = vld [vmem:[#allocation8 + $0x2c] sm:$0xf]
    %v369 = vld [vmem:[#allocation8 + $0x30] sm:$0xff]
    %v370 = vld [vmem:[#allocation8 + $0x38] sm:$0xf]
    %v371 = vld [vmem:[#allocation8 + $0x3c] sm:$0xff]
    %v372 = vld [vmem:[#allocation8 + $0x44] sm:$0xf]
    %v373 = vld [vmem:[#allocation8 + $0x48] sm:$0xff]
    %v374 = vld [vmem:[#allocation8 + $0x50] sm:$0xf]
    %v375 = vld [vmem:[#allocation8 + $0x54] sm:$0xff]
    %v376 = vld [vmem:[#allocation8 + $0x5c] sm:$0xf]
    %v377 = vld [vmem:[#allocation8 + $0x60] sm:$0xff]
    %v378 = vld [vmem:[#allocation8 + $0x68] sm:$0xf]
    %v379 = vld [vmem:[#allocation8 + $0x6c] sm:$0xff]
    %v380 = vld [vmem:[#allocation8 + $0x74] sm:$0xf]
    %v381 = vld [vmem:[#allocation8 + $0x78] sm:$0xff]
    %v382 = vld [vmem:[#allocation8 + $0x80] sm:$0xf]
    %v383 = vld [vmem:[#allocation8 + $0x84] sm:$0xff]
    %v384 = vld [vmem:[#allocation8 + $0x8c] sm:$0xf]
    %v385 = vld [vmem:[#allocation8 + $0x90] sm:$0xff]
    %v386 = vld [vmem:[#allocation8 + $0x98] sm:$0xf]
    %v387 = vld [vmem:[#allocation8 + $0x9c] sm:$0xff]
    %v388 = vld [vmem:[#allocation8 + $0xa4] sm:$0xf]
    %v389 = vld [vmem:[#allocation8 + $0xa8] sm:$0xff]
    %v390 = vld [vmem:[#allocation8 + $0xb0] sm:$0xf]
    %v391 = vld [vmem:[#allocation8 + $0xb4] sm:$0xff]
    %v392 = vld [vmem:[#allocation8 + $0xbc] sm:$0xf]
    %v393 = vld [vmem:[#allocation8 + $0xc0] sm:$0xff]
    %v394 = vld [vmem:[#allocation8 + $0xc8] sm:$0xf]
    %v395 = vld [vmem:[#allocation8 + $0xcc] sm:$0xff]
    %v396 = vld [vmem:[#allocation8 + $0xd4] sm:$0xf]
    %v397 = vld [vmem:[#allocation8 + $0xd8] sm:$0xff]
    %v398 = vld [vmem:[#allocation8 + $0xe0] sm:$0xf]
    %v399 = vld [vmem:[#allocation8 + $0xe4] sm:$0xff]
    %v400 = vld [vmem:[#allocation8 + $0xec] sm:$0xf]
    %v401 = vld [vmem:[#allocation8 + $0xf0] sm:$0xff]
    %v402 = vld [vmem:[#allocation8 + $0xf8] sm:$0xf]
    %v403 = vld [vmem:[#allocation8 + $0xfc] sm:$0xff]
    %v404 = vld [vmem:[#allocation8 + $0x104] sm:$0xf]
    %v405 = vld [vmem:[#allocation8 + $0x108] sm:$0xff]
    %v406 = vld [vmem:[#allocation8 + $0x110] sm:$0xf]
    %v407 = vld [vmem:[#allocation8 + $0x114] sm:$0xff]
    %v408 = vld [vmem:[#allocation8 + $0x11c] sm:$0xf]
    %v409 = vld [vmem:[#allocation8 + $0x120] sm:$0xff]
    %v410 = vld [vmem:[#allocation8 + $0x128] sm:$0xf]
    %v411 = vld [vmem:[#allocation8 + $0x12c] sm:$0xff]
    %v412 = vld [vmem:[#allocation8 + $0x134] sm:$0xf]
    %v413 = vld [vmem:[#allocation8 + $0x138] sm:$0xff]
    %v414 = vld [vmem:[#allocation8 + $0x140] sm:$0xf]
    %v415 = vld [vmem:[#allocation8 + $0x144] sm:$0xff]
    %v416 = vld [vmem:[#allocation8 + $0x14c] sm:$0xf]
    %v417 = vld [vmem:[#allocation8 + $0x150] sm:$0xff]
    %v418 = vld [vmem:[#allocation8 + $0x158] sm:$0xf]
    %v419 = vld [vmem:[#allocation8 + $0x15c] sm:$0xff]
    %v420 = vld [vmem:[#allocation8 + $0x164] sm:$0xf]
    %v421 = vld [vmem:[#allocation8 + $0x168] sm:$0xff]
    %v422 = vld [vmem:[#allocation8 + $0x170] sm:$0xf]
    %v423 = vld [vmem:[#allocation8 + $0x174] sm:$0xff]
    %v424 = vld [vmem:[#allocation8 + $0x17c] sm:$0xf]
    %v425 = vld [vmem:[#allocation8 + $0x180] sm:$0xff]
    %v426 = vld [vmem:[#allocation8 + $0x188] sm:$0xf]
    %v427 = vld [vmem:[#allocation8 + $0x18c] sm:$0xff]
    %v428 = vld [vmem:[#allocation8 + $0x194] sm:$0xf]
    %v429 = vld [vmem:[#allocation8 + $0x198] sm:$0xff]
    %v430 = vld [vmem:[#allocation8 + $0x1a0] sm:$0xf]
    %v431 = vld [vmem:[#allocation8 + $0x1a4] sm:$0xff]
    %v432 = vld [vmem:[#allocation8 + $0x1ac] sm:$0xf]
    %v433 = vld [vmem:[#allocation8 + $0x1b0] sm:$0xff]
    %v434 = vld [vmem:[#allocation8 + $0x1b8] sm:$0xf]
    %v435 = vld [vmem:[#allocation8 + $0x1bc] sm:$0xff]
    %v436 = vld [vmem:[#allocation8 + $0x1c4] sm:$0xf]
    %v437 = vld [vmem:[#allocation8 + $0x1c8] sm:$0xff]
    %v438 = vld [vmem:[#allocation8 + $0x1d0] sm:$0xf]
    %v439 = vld [vmem:[#allocation8 + $0x1d4] sm:$0xff]
    %v440 = vld [vmem:[#allocation8 + $0x1dc] sm:$0xf]
    %v441 = vld [vmem:[#allocation8 + $0x1e0] sm:$0xff]
    %v442 = vld [vmem:[#allocation8 + $0x1e8] sm:$0xf]
    %v443 = vld [vmem:[#allocation8 + $0x1ec] sm:$0xff]
    %v444 = vld [vmem:[#allocation8 + $0x1f4] sm:$0xf]
    %v445 = vld [vmem:[#allocation8 + $0x1f8] sm:$0xff]
    %v446 = vld [vmem:[#allocation8 + $0x200] sm:$0xf]
    %v447 = vld [vmem:[#allocation8 + $0x204] sm:$0xff]
    %v448 = vld [vmem:[#allocation8 + $0x20c] sm:$0xf]
    %v449 = vld [vmem:[#allocation8 + $0x210] sm:$0xff]
    %v450 = vld [vmem:[#allocation8 + $0x218] sm:$0xf]
    %v451 = vld [vmem:[#allocation8 + $0x21c] sm:$0xff]
    %v452 = vld [vmem:[#allocation8 + $0x224] sm:$0xf]
    %v453 = vld [vmem:[#allocation8 + $0x228] sm:$0xff]
    %v454 = vld [vmem:[#allocation8 + $0x230] sm:$0xf]
    %v455 = vld [vmem:[#allocation8 + $0x234] sm:$0xff]
    %v456 = vld [vmem:[#allocation8 + $0x23c] sm:$0xf]
    %v457 = vld [vmem:[#allocation8 + $0x240] sm:$0xff]
    %v458 = vld [vmem:[#allocation8 + $0x248] sm:$0xf]
    %v459 = vld [vmem:[#allocation8 + $0x24c] sm:$0xff]
    %v460 = vld [vmem:[#allocation8 + $0x254] sm:$0xf]
    %v461 = vld [vmem:[#allocation8 + $0x258] sm:$0xff]
    %v462 = vld [vmem:[#allocation8 + $0x260] sm:$0xf]
    %v463 = vld [vmem:[#allocation8 + $0x264] sm:$0xff]
    %v464 = vld [vmem:[#allocation8 + $0x26c] sm:$0xf]
    %v465 = vld [vmem:[#allocation8 + $0x270] sm:$0xff]
    %v466 = vld [vmem:[#allocation8 + $0x278] sm:$0xf]
    %v467 = vld [vmem:[#allocation8 + $0x27c] sm:$0xff]
    %v468 = vld [vmem:[#allocation8 + $0x284] sm:$0xf]
    %v469 = vld [vmem:[#allocation8 + $0x288] sm:$0xff]
    %v470 = vld [vmem:[#allocation8 + $0x290] sm:$0xf]
    %v471 = vld [vmem:[#allocation8 + $0x294] sm:$0xff]
    %v472 = vld [vmem:[#allocation8 + $0x29c] sm:$0xf]
    %v473 = vld [vmem:[#allocation8 + $0x2a0] sm:$0xff]
    %v474 = vld [vmem:[#allocation8 + $0x2a8] sm:$0xf]
    %v475 = vld [vmem:[#allocation8 + $0x2ac] sm:$0xff]
    %v476 = vld [vmem:[#allocation8 + $0x2b4] sm:$0xf]
    %v477 = vld [vmem:[#allocation8 + $0x2b8] sm:$0xff]
    %v478 = vld [vmem:[#allocation8 + $0x2c0] sm:$0xf]
    %v479 = vld [vmem:[#allocation8 + $0x2c4] sm:$0xff]
    %v480 = vld [vmem:[#allocation8 + $0x2cc] sm:$0xf]
    %v481 = vld [vmem:[#allocation8 + $0x2d0] sm:$0xff]
    %v482 = vld [vmem:[#allocation8 + $0x2d8] sm:$0xf]
    %v483 = vld [vmem:[#allocation8 + $0x2dc] sm:$0xff]
    %v484 = vld [vmem:[#allocation8 + $0x2e4] sm:$0xf]
    %v485 = vld [vmem:[#allocation8 + $0x2e8] sm:$0xff]
    %v486 = vld [vmem:[#allocation8 + $0x2f0] sm:$0xf]
    %v487 = vld [vmem:[#allocation8 + $0x2f4] sm:$0xff]
    %v488 = vld [vmem:[#allocation8 + $0x2fc] sm:$0xf]
    %v617 = vunpack.c.l.b16 %v361
    %v618 = vunpack.c.h.b16 %v361
    %v619 = vunpack.c.l.b16 %v362
    %v620 = vunpack.c.l.b16 %v363
    %v621 = vunpack.c.h.b16 %v363
    %v622 = vunpack.c.l.b16 %v364
    %v623 = vunpack.c.l.b16 %v365
    %v624 = vunpack.c.h.b16 %v365
    %v625 = vunpack.c.l.b16 %v366
    %v626 = vunpack.c.l.b16 %v367
    %v627 = vunpack.c.h.b16 %v367
    %v628 = vunpack.c.l.b16 %v368
    %v629 = vunpack.c.l.b16 %v369
    %v630 = vunpack.c.h.b16 %v369
    %v631 = vunpack.c.l.b16 %v370
    %v632 = vunpack.c.l.b16 %v371
    %v633 = vunpack.c.h.b16 %v371
    %v634 = vunpack.c.l.b16 %v372
    %v635 = vunpack.c.l.b16 %v373
    %v636 = vunpack.c.h.b16 %v373
    %v637 = vunpack.c.l.b16 %v374
    %v638 = vunpack.c.l.b16 %v375
    %v639 = vunpack.c.h.b16 %v375
    %v640 = vunpack.c.l.b16 %v376
    %v641 = vunpack.c.l.b16 %v377
    %v642 = vunpack.c.h.b16 %v377
    %v643 = vunpack.c.l.b16 %v378
    %v644 = vunpack.c.l.b16 %v379
    %v645 = vunpack.c.h.b16 %v379
    %v646 = vunpack.c.l.b16 %v380
    %v647 = vunpack.c.l.b16 %v381
    %v648 = vunpack.c.h.b16 %v381
    %v649 = vunpack.c.l.b16 %v382
    %v650 = vunpack.c.l.b16 %v383
    %v651 = vunpack.c.h.b16 %v383
    %v652 = vunpack.c.l.b16 %v384
    %v653 = vunpack.c.l.b16 %v385
    %v654 = vunpack.c.h.b16 %v385
    %v655 = vunpack.c.l.b16 %v386
    %v656 = vunpack.c.l.b16 %v387
    %v657 = vunpack.c.h.b16 %v387
    %v658 = vunpack.c.l.b16 %v388
    %v659 = vunpack.c.l.b16 %v389
    %v660 = vunpack.c.h.b16 %v389
    %v661 = vunpack.c.l.b16 %v390
    %v662 = vunpack.c.l.b16 %v391
    %v663 = vunpack.c.h.b16 %v391
    %v664 = vunpack.c.l.b16 %v392
    %v665 = vunpack.c.l.b16 %v393
    %v666 = vunpack.c.h.b16 %v393
    %v667 = vunpack.c.l.b16 %v394
    %v668 = vunpack.c.l.b16 %v395
    %v669 = vunpack.c.h.b16 %v395
    %v670 = vunpack.c.l.b16 %v396
    %v671 = vunpack.c.l.b16 %v397
    %v672 = vunpack.c.h.b16 %v397
    %v673 = vunpack.c.l.b16 %v398
    %v674 = vunpack.c.l.b16 %v399
    %v675 = vunpack.c.h.b16 %v399
    %v676 = vunpack.c.l.b16 %v400
    %v677 = vunpack.c.l.b16 %v401
    %v678 = vunpack.c.h.b16 %v401
    %v679 = vunpack.c.l.b16 %v402
    %v680 = vunpack.c.l.b16 %v403
    %v681 = vunpack.c.h.b16 %v403
    %v682 = vunpack.c.l.b16 %v404
    %v683 = vunpack.c.l.b16 %v405
    %v684 = vunpack.c.h.b16 %v405
    %v685 = vunpack.c.l.b16 %v406
    %v686 = vunpack.c.l.b16 %v407
    %v687 = vunpack.c.h.b16 %v407
    %v688 = vunpack.c.l.b16 %v408
    %v689 = vunpack.c.l.b16 %v409
    %v690 = vunpack.c.h.b16 %v409
    %v691 = vunpack.c.l.b16 %v410
    %v692 = vunpack.c.l.b16 %v411
    %v693 = vunpack.c.h.b16 %v411
    %v694 = vunpack.c.l.b16 %v412
    %v695 = vunpack.c.l.b16 %v413
    %v696 = vunpack.c.h.b16 %v413
    %v697 = vunpack.c.l.b16 %v414
    %v698 = vunpack.c.l.b16 %v415
    %v699 = vunpack.c.h.b16 %v415
    %v700 = vunpack.c.l.b16 %v416
    %v701 = vunpack.c.l.b16 %v417
    %v702 = vunpack.c.h.b16 %v417
    %v703 = vunpack.c.l.b16 %v418
    %v704 = vunpack.c.l.b16 %v419
    %v705 = vunpack.c.h.b16 %v419
    %v706 = vunpack.c.l.b16 %v420
    %v707 = vunpack.c.l.b16 %v421
    %v708 = vunpack.c.h.b16 %v421
    %v709 = vunpack.c.l.b16 %v422
    %v710 = vunpack.c.l.b16 %v423
    %v711 = vunpack.c.h.b16 %v423
    %v712 = vunpack.c.l.b16 %v424
    %v713 = vunpack.c.l.b16 %v425
    %v714 = vunpack.c.h.b16 %v425
    %v715 = vunpack.c.l.b16 %v426
    %v716 = vunpack.c.l.b16 %v427
    %v717 = vunpack.c.h.b16 %v427
    %v718 = vunpack.c.l.b16 %v428
    %v719 = vunpack.c.l.b16 %v429
    %v720 = vunpack.c.h.b16 %v429
    %v721 = vunpack.c.l.b16 %v430
    %v722 = vunpack.c.l.b16 %v431
    %v723 = vunpack.c.h.b16 %v431
    %v724 = vunpack.c.l.b16 %v432
    %v725 = vunpack.c.l.b16 %v433
    %v726 = vunpack.c.h.b16 %v433
    %v727 = vunpack.c.l.b16 %v434
    %v728 = vunpack.c.l.b16 %v435
    %v729 = vunpack.c.h.b16 %v435
    %v730 = vunpack.c.l.b16 %v436
    %v731 = vunpack.c.l.b16 %v437
    %v732 = vunpack.c.h.b16 %v437
    %v733 = vunpack.c.l.b16 %v438
    %v734 = vunpack.c.l.b16 %v439
    %v735 = vunpack.c.h.b16 %v439
    %v736 = vunpack.c.l.b16 %v440
    %v737 = vunpack.c.l.b16 %v441
    %v738 = vunpack.c.h.b16 %v441
    %v739 = vunpack.c.l.b16 %v442
    %v740 = vunpack.c.l.b16 %v443
    %v741 = vunpack.c.h.b16 %v443
    %v742 = vunpack.c.l.b16 %v444
    %v743 = vunpack.c.l.b16 %v445
    %v744 = vunpack.c.h.b16 %v445
    %v745 = vunpack.c.l.b16 %v446
    %v746 = vunpack.c.l.b16 %v447
    %v747 = vunpack.c.h.b16 %v447
    %v748 = vunpack.c.l.b16 %v448
    %v749 = vunpack.c.l.b16 %v449
    %v750 = vunpack.c.h.b16 %v449
    %v751 = vunpack.c.l.b16 %v450
    %v752 = vunpack.c.l.b16 %v451
    %v753 = vunpack.c.h.b16 %v451
    %v754 = vunpack.c.l.b16 %v452
    %v755 = vunpack.c.l.b16 %v453
    %v756 = vunpack.c.h.b16 %v453
    %v757 = vunpack.c.l.b16 %v454
    %v758 = vunpack.c.l.b16 %v455
    %v759 = vunpack.c.h.b16 %v455
    %v760 = vunpack.c.l.b16 %v456
    %v761 = vunpack.c.l.b16 %v457
    %v762 = vunpack.c.h.b16 %v457
    %v763 = vunpack.c.l.b16 %v458
    %v764 = vunpack.c.l.b16 %v459
    %v765 = vunpack.c.h.b16 %v459
    %v766 = vunpack.c.l.b16 %v460
    %v767 = vunpack.c.l.b16 %v461
    %v768 = vunpack.c.h.b16 %v461
    %v769 = vunpack.c.l.b16 %v462
    %v770 = vunpack.c.l.b16 %v463
    %v771 = vunpack.c.h.b16 %v463
    %v772 = vunpack.c.l.b16 %v464
    %v773 = vunpack.c.l.b16 %v465
    %v774 = vunpack.c.h.b16 %v465
    %v775 = vunpack.c.l.b16 %v466
    %v776 = vunpack.c.l.b16 %v467
    %v777 = vunpack.c.h.b16 %v467
    %v778 = vunpack.c.l.b16 %v468
    %v779 = vunpack.c.l.b16 %v469
    %v780 = vunpack.c.h.b16 %v469
    %v781 = vunpack.c.l.b16 %v470
    %v782 = vunpack.c.l.b16 %v471
    %v783 = vunpack.c.h.b16 %v471
    %v784 = vunpack.c.l.b16 %v472
    %v785 = vunpack.c.l.b16 %v473
    %v786 = vunpack.c.h.b16 %v473
    %v787 = vunpack.c.l.b16 %v474
    %v788 = vunpack.c.l.b16 %v475
    %v789 = vunpack.c.h.b16 %v475
    %v790 = vunpack.c.l.b16 %v476
    %v791 = vunpack.c.l.b16 %v477
    %v792 = vunpack.c.h.b16 %v477
    %v793 = vunpack.c.l.b16 %v478
    %v794 = vunpack.c.l.b16 %v479
    %v795 = vunpack.c.h.b16 %v479
    %v796 = vunpack.c.l.b16 %v480
    %v797 = vunpack.c.l.b16 %v481
    %v798 = vunpack.c.h.b16 %v481
    %v799 = vunpack.c.l.b16 %v482
    %v800 = vunpack.c.l.b16 %v483
    %v801 = vunpack.c.h.b16 %v483
    %v802 = vunpack.c.l.b16 %v484
    %v803 = vunpack.c.l.b16 %v485
    %v804 = vunpack.c.h.b16 %v485
    %v805 = vunpack.c.l.b16 %v486
    %v806 = vunpack.c.l.b16 %v487
    %v807 = vunpack.c.h.b16 %v487
    %v808 = vunpack.c.l.b16 %v488
    %v809 = vpack.c.b16 %v620, %v617
    %v810 = vpack.c.b16 %v621, %v618
    %v811 = vpack.c.b16 %v622, %v619
    %v812 = vpack.c.b16 %v626, %v623
    %v813 = vpack.c.b16 %v627, %v624
    %v814 = vpack.c.b16 %v628, %v625
    %v815 = vpack.c.b16 %v632, %v629
    %v816 = vpack.c.b16 %v633, %v630
    %v817 = vpack.c.b16 %v634, %v631
    %v818 = vpack.c.b16 %v638, %v635
    %v819 = vpack.c.b16 %v639, %v636
    %v820 = vpack.c.b16 %v640, %v637
    %v821 = vpack.c.b16 %v644, %v641
    %v822 = vpack.c.b16 %v645, %v642
    %v823 = vpack.c.b16 %v646, %v643
    %v824 = vpack.c.b16 %v650, %v647
    %v825 = vpack.c.b16 %v651, %v648
    %v826 = vpack.c.b16 %v652, %v649
    %v827 = vpack.c.b16 %v656, %v653
    %v828 = vpack.c.b16 %v657, %v654
    %v829 = vpack.c.b16 %v658, %v655
    %v830 = vpack.c.b16 %v662, %v659
    %v831 = vpack.c.b16 %v663, %v660
    %v832 = vpack.c.b16 %v664, %v661
    %v833 = vpack.c.b16 %v668, %v665
    %v834 = vpack.c.b16 %v669, %v666
    %v835 = vpack.c.b16 %v670, %v667
    %v836 = vpack.c.b16 %v674, %v671
    %v837 = vpack.c.b16 %v675, %v672
    %v838 = vpack.c.b16 %v676, %v673
    %v839 = vpack.c.b16 %v680, %v677
    %v840 = vpack.c.b16 %v681, %v678
    %v841 = vpack.c.b16 %v682, %v679
    %v842 = vpack.c.b16 %v686, %v683
    %v843 = vpack.c.b16 %v687, %v684
    %v844 = vpack.c.b16 %v688, %v685
    %v845 = vpack.c.b16 %v692, %v689
    %v846 = vpack.c.b16 %v693, %v690
    %v847 = vpack.c.b16 %v694, %v691
    %v848 = vpack.c.b16 %v698, %v695
    %v849 = vpack.c.b16 %v699, %v696
    %v850 = vpack.c.b16 %v700, %v697
    %v851 = vpack.c.b16 %v704, %v701
    %v852 = vpack.c.b16 %v705, %v702
    %v853 = vpack.c.b16 %v706, %v703
    %v854 = vpack.c.b16 %v710, %v707
    %v855 = vpack.c.b16 %v711, %v708
    %v856 = vpack.c.b16 %v712, %v709
    %v857 = vpack.c.b16 %v716, %v713
    %v858 = vpack.c.b16 %v717, %v714
    %v859 = vpack.c.b16 %v718, %v715
    %v860 = vpack.c.b16 %v722, %v719
    %v861 = vpack.c.b16 %v723, %v720
    %v862 = vpack.c.b16 %v724, %v721
    %v863 = vpack.c.b16 %v728, %v725
    %v864 = vpack.c.b16 %v729, %v726
    %v865 = vpack.c.b16 %v730, %v727
    %v866 = vpack.c.b16 %v734, %v731
    %v867 = vpack.c.b16 %v735, %v732
    %v868 = vpack.c.b16 %v736, %v733
    %v869 = vpack.c.b16 %v740, %v737
    %v870 = vpack.c.b16 %v741, %v738
    %v871 = vpack.c.b16 %v742, %v739
    %v872 = vpack.c.b16 %v746, %v743
    %v873 = vpack.c.b16 %v747, %v744
    %v874 = vpack.c.b16 %v748, %v745
    %v875 = vpack.c.b16 %v752, %v749
    %v876 = vpack.c.b16 %v753, %v750
    %v877 = vpack.c.b16 %v754, %v751
    %v878 = vpack.c.b16 %v758, %v755
    %v879 = vpack.c.b16 %v759, %v756
    %v880 = vpack.c.b16 %v760, %v757
    %v881 = vpack.c.b16 %v764, %v761
    %v882 = vpack.c.b16 %v765, %v762
    %v883 = vpack.c.b16 %v766, %v763
    %v884 = vpack.c.b16 %v770, %v767
    %v885 = vpack.c.b16 %v771, %v768
    %v886 = vpack.c.b16 %v772, %v769
    %v887 = vpack.c.b16 %v776, %v773
    %v888 = vpack.c.b16 %v777, %v774
    %v889 = vpack.c.b16 %v778, %v775
    %v890 = vpack.c.b16 %v782, %v779
    %v891 = vpack.c.b16 %v783, %v780
    %v892 = vpack.c.b16 %v784, %v781
    %v893 = vpack.c.b16 %v788, %v785
    %v894 = vpack.c.b16 %v789, %v786
    %v895 = vpack.c.b16 %v790, %v787
    %v896 = vpack.c.b16 %v794, %v791
    %v897 = vpack.c.b16 %v795, %v792
    %v898 = vpack.c.b16 %v796, %v793
    %v899 = vpack.c.b16 %v800, %v797
    %v900 = vpack.c.b16 %v801, %v798
    %v901 = vpack.c.b16 %v802, %v799
    %v902 = vpack.c.b16 %v806, %v803
    %v903 = vpack.c.b16 %v807, %v804
    %v904 = vpack.c.b16 %v808, %v805
    %1001 = vmatprep.subr.bf16.mxu0 %v831
    %1002 = vmatpush1.bf16.msra.mxu0 %v830
    %1003 = vmatprep.subr.bf16.mxu0 %v828
    %1004 = vmatpush1.bf16.msra.mxu0 %v827
    %1005 = vmatprep.subr.bf16.mxu0 %v825
    %1006 = vmatpush1.bf16.msra.mxu0 %v824
    %1007 = vmatprep.subr.bf16.mxu0 %v822
    %1008 = vmatpush1.bf16.msra.mxu0 %v821
    %1009 = vmatprep.subr.bf16.mxu0 %v819
    %1010 = vmatpush1.bf16.msra.mxu0 %v818
    %1011 = vmatprep.subr.bf16.mxu0 %v816
    %1012 = vmatpush1.bf16.msra.mxu0 %v815
    %1013 = vmatprep.subr.bf16.mxu0 %v813
    %1014 = vmatpush1.bf16.msra.mxu0 %v812
    %1015 = vmatprep.subr.bf16.mxu0 %v810
    %1016 = vmatpush1.bf16.msra.mxu0 %v809
    %1017 = vmatprep.subr.bf16.mxu0 %v855
    %1018 = vmatpush2.bf16.msra.mxu0 %v854
    %1019 = vmatprep.subr.bf16.mxu0 %v852
    %1020 = vmatpush2.bf16.msra.mxu0 %v851
    %1021 = vmatprep.subr.bf16.mxu0 %v849
    %1022 = vmatpush2.bf16.msra.mxu0 %v848
    %1023 = vmatprep.subr.bf16.mxu0 %v846
    %1024 = vmatpush2.bf16.msra.mxu0 %v845
    %1025 = vmatprep.subr.bf16.mxu0 %v843
    %1026 = vmatpush2.bf16.msra.mxu0 %v842
    %1027 = vmatprep.subr.bf16.mxu0 %v840
    %1028 = vmatpush2.bf16.msra.mxu0 %v839
    %1029 = vmatprep.subr.bf16.mxu0 %v837
    %1030 = vmatpush2.bf16.msra.mxu0 %v836
    %1031 = vmatprep.subr.bf16.mxu0 %v834
    %1032 = vmatpush2.bf16.msra.mxu0 %v833
    %1033 = vmatprep.mubr.bf16.mxu0 %v358
    %1034 = vmatmul.mubr.bf16.gmra.mxu0 %v357
    %v1035 = vpop.f32.mrf.mxu0
    %v1036 = vadd.f32 0.0, %v1035
    %v1037 = vpop.f32.mrf.mxu0
    %v1038 = vadd.f32 0.0, %v1037
    %v1039 = vpop.f32.mrf.mxu0
    %v1040 = vpop.f32.mrf.mxu0
    %1041 = vdwg.mxu0
    %1042 = vmatprep.subr.bf16.mxu0 %v879
    %1043 = vmatpush1.bf16.msra.mxu0 %v878
    %1044 = vmatprep.subr.bf16.mxu0 %v876
    %1045 = vmatpush1.bf16.msra.mxu0 %v875
    %1046 = vmatprep.subr.bf16.mxu0 %v873
    %1047 = vmatpush1.bf16.msra.mxu0 %v872
    %1048 = vmatprep.subr.bf16.mxu0 %v870
    %1049 = vmatpush1.bf16.msra.mxu0 %v869
    %1050 = vmatprep.subr.bf16.mxu0 %v867
    %1051 = vmatpush1.bf16.msra.mxu0 %v866
    %1052 = vmatprep.subr.bf16.mxu0 %v864
    %1053 = vmatpush1.bf16.msra.mxu0 %v863
    %1054 = vmatprep.subr.bf16.mxu0 %v861
    %1055 = vmatpush1.bf16.msra.mxu0 %v860
    %1056 = vmatprep.subr.bf16.mxu0 %v858
    %1057 = vmatpush1.bf16.msra.mxu0 %v857
    %1058 = vmatprep.subr.bf16.mxu0 %v903
    %1059 = vmatpush2.bf16.msra.mxu0 %v902
    %1060 = vmatprep.subr.bf16.mxu0 %v900
    %1061 = vmatpush2.bf16.msra.mxu0 %v899
    %1062 = vmatprep.subr.bf16.mxu0 %v897
    %1063 = vmatpush2.bf16.msra.mxu0 %v896
    %1064 = vmatprep.subr.bf16.mxu0 %v894
    %1065 = vmatpush2.bf16.msra.mxu0 %v893
    %1066 = vmatprep.subr.bf16.mxu0 %v891
    %1067 = vmatpush2.bf16.msra.mxu0 %v890
    %1068 = vmatprep.subr.bf16.mxu0 %v888
    %1069 = vmatpush2.bf16.msra.mxu0 %v887
    %1070 = vmatprep.subr.bf16.mxu0 %v885
    %1071 = vmatpush2.bf16.msra.mxu0 %v884
    %1072 = vmatprep.subr.bf16.mxu0 %v882
    %1073 = vmatpush2.bf16.msra.mxu0 %v881
    %1074 = vmatprep.mubr.bf16.mxu0 %v360
    %1075 = vmatmul.mubr.bf16.gmra.mxu0 %v359
    %v1076 = vpop.f32.mrf.mxu0
    %v1077 = vadd.f32 %v1036, %v1076
    %v1078 = vpop.f32.mrf.mxu0
    %v1079 = vadd.f32 %v1038, %v1078
    %v1080 = vpop.f32.mrf.mxu0
    %v1081 = vpop.f32.mrf.mxu0
    %1082 = vdwg.mxu0
    %1083 = vmatprep.subr.bf16.mxu0 0
    %1084 = vmatpush1.bf16.msra.mxu0 %v832
    %1085 = vmatprep.subr.bf16.mxu0 0
    %1086 = vmatpush1.bf16.msra.mxu0 %v829
    %1087 = vmatprep.subr.bf16.mxu0 0
    %1088 = vmatpush1.bf16.msra.mxu0 %v826
    %1089 = vmatprep.subr.bf16.mxu0 0
    %1090 = vmatpush1.bf16.msra.mxu0 %v823
    %1091 = vmatprep.subr.bf16.mxu0 0
    %1092 = vmatpush1.bf16.msra.mxu0 %v820
    %1093 = vmatprep.subr.bf16.mxu0 0
    %1094 = vmatpush1.bf16.msra.mxu0 %v817
    %1095 = vmatprep.subr.bf16.mxu0 0
    %1096 = vmatpush1.bf16.msra.mxu0 %v814
    %1097 = vmatprep.subr.bf16.mxu0 0
    %1098 = vmatpush1.bf16.msra.mxu0 %v811
    %1099 = vmatprep.subr.bf16.mxu0 0
    %1100 = vmatpush2.bf16.msra.mxu0 %v856
    %1101 = vmatprep.subr.bf16.mxu0 0
    %1102 = vmatpush2.bf16.msra.mxu0 %v853
    %1103 = vmatprep.subr.bf16.mxu0 0
    %1104 = vmatpush2.bf16.msra.mxu0 %v850
    %1105 = vmatprep.subr.bf16.mxu0 0
    %1106 = vmatpush2.bf16.msra.mxu0 %v847
    %1107 = vmatprep.subr.bf16.mxu0 0
    %1108 = vmatpush2.bf16.msra.mxu0 %v844
    %1109 = vmatprep.subr.bf16.mxu0 0
    %1110 = vmatpush2.bf16.msra.mxu0 %v841
    %1111 = vmatprep.subr.bf16.mxu0 0
    %1112 = vmatpush2.bf16.msra.mxu0 %v838
    %1113 = vmatprep.subr.bf16.mxu0 0
    %1114 = vmatpush2.bf16.msra.mxu0 %v835
    %1115 = vmatprep.mubr.bf16.mxu0 %v358
    %1116 = vmatmul.mubr.bf16.gmra.mxu0 %v357
    %v1117 = vpop.f32.mrf.mxu0
    %v1118 = vadd.f32 0.0, %v1117
    %v1119 = vpop.f32.mrf.mxu0
    %v1120 = vpop.f32.mrf.mxu0
    %v1121 = vpop.f32.mrf.mxu0
    %1122 = vdwg.mxu0
    %1123 = vmatprep.subr.bf16.mxu0 0
    %1124 = vmatpush1.bf16.msra.mxu0 %v880
    %1125 = vmatprep.subr.bf16.mxu0 0
    %1126 = vmatpush1.bf16.msra.mxu0 %v877
    %1127 = vmatprep.subr.bf16.mxu0 0
    %1128 = vmatpush1.bf16.msra.mxu0 %v874
    %1129 = vmatprep.subr.bf16.mxu0 0
    %1130 = vmatpush1.bf16.msra.mxu0 %v871
    %1131 = vmatprep.subr.bf16.mxu0 0
    %1132 = vmatpush1.bf16.msra.mxu0 %v868
    %1133 = vmatprep.subr.bf16.mxu0 0
    %1134 = vmatpush1.bf16.msra.mxu0 %v865
    %1135 = vmatprep.subr.bf16.mxu0 0
    %1136 = vmatpush1.bf16.msra.mxu0 %v862
    %1137 = vmatprep.subr.bf16.mxu0 0
    %1138 = vmatpush1.bf16.msra.mxu0 %v859
    %1139 = vmatprep.subr.bf16.mxu0 0
    %1140 = vmatpush2.bf16.msra.mxu0 %v904
    %1141 = vmatprep.subr.bf16.mxu0 0
    %1142 = vmatpush2.bf16.msra.mxu0 %v901
    %1143 = vmatprep.subr.bf16.mxu0 0
    %1144 = vmatpush2.bf16.msra.mxu0 %v898
    %1145 = vmatprep.subr.bf16.mxu0 0
    %1146 = vmatpush2.bf16.msra.mxu0 %v895
    %1147 = vmatprep.subr.bf16.mxu0 0
    %1148 = vmatpush2.bf16.msra.mxu0 %v892
    %1149 = vmatprep.subr.bf16.mxu0 0
    %1150 = vmatpush2.bf16.msra.mxu0 %v889
    %1151 = vmatprep.subr.bf16.mxu0 0
    %1152 = vmatpush2.bf16.msra.mxu0 %v886
    %1153 = vmatprep.subr.bf16.mxu0 0
    %1154 = vmatpush2.bf16.msra.mxu0 %v883
    %1155 = vmatprep.mubr.bf16.mxu0 %v360
    %1156 = vmatmul.mubr.bf16.gmra.mxu0 %v359
    %v1157 = vpop.f32.mrf.mxu0
    %v1158 = vadd.f32 %v1118, %v1157
    %v1159 = vpop.f32.mrf.mxu0
    %v1160 = vpop.f32.mrf.mxu0
    %v1161 = vpop.f32.mrf.mxu0
    %1162 = vdwg.mxu0
    %v1163 = vpack.c.bf16 %v1077, %v1077
    %v1164 = vpack.c.bf16 %v1079, %v1079
    %v1165 = vpack.c.bf16 %v1158, %v1158
    %v1166 = vld [vmem:[%s4] sm:$0x7]
    %v1169 = vunpack.c.l.s4 1966171168
    %v1170 = vunpack.c.0.s8 %v1169
    %v1171 = vlaneseq
    %v1172 = vshrl.u32 %v1171, 7
    %v1173 = vsub.s32 %v1170, %v1172
    %v1174 = vrot.slane %v1166, %v1173
    %v1175 = vcombine.high %v1174, %v1174
    %v1177 = vunpack.c.l.s4 1966171168
    %v1178 = vunpack.c.0.s8 %v1177
    %v1179 = vlaneseq
    %v1180 = vshrl.u32 %v1179, 7
    %v1181 = vsub.s32 %v1178, %v1180
    %v1182 = vrot.slane %v1174, %v1181
    %v1184 = vunpack.c.l.s4 1966171168
    %v1185 = vunpack.c.0.s8 %v1184
    %v1186 = vlaneseq
    %v1187 = vshrl.u32 %v1186, 7
    %v1188 = vsub.s32 %v1185, %v1187
    %v1189 = vrot.slane %v1175, %v1188
    %v1190 = vcombine.high %v1182, %v1182
    %v1192 = vpack.i.b16 %v1182, %v1182
    %v1194 = vlaneseq
    %v1195 = vshrl.u32 %v1194, 7
    %v1196 = vsub.s32 0, %v1195
    %v1197 = vrot.slane %v1192, %v1196
    %v1199 = vpack.i.b16 %v1189, %v1189
    %v1201 = vlaneseq
    %v1202 = vshrl.u32 %v1201, 7
    %v1203 = vsub.s32 0, %v1202
    %v1204 = vrot.slane %v1199, %v1203
    %v1206 = vpack.i.b16 %v1190, %v1190
    %v1208 = vlaneseq
    %v1209 = vshrl.u32 %v1208, 7
    %v1210 = vsub.s32 0, %v1209
    %v1211 = vrot.slane %v1206, %v1210
    %v1212 = vadd.bf16 %v1163, %v1197
    %v1213 = vadd.bf16 %v1164, %v1204
    %v1214 = vadd.bf16 %v1165, %v1211
    %v1215 = vmax.bf16 %v1212, 0
    %v1216 = vmax.bf16 %v1213, 0
    %v1217 = vmax.bf16 %v1214, 0
    %v1218 = vld [vmem:[#allocation10] sm:$0xff]
    %v1219 = vld [vmem:[#allocation10 + $0x8] sm:$0xff]
    %v1220 = vld [vmem:[#allocation10 + $0x10] sm:$0xff]
    %v1221 = vld [vmem:[#allocation10 + $0x18] sm:$0xff]
    %v1222 = vld [vmem:[#allocation10 + $0x20] sm:$0xff]
    %v1223 = vld [vmem:[#allocation10 + $0x28] sm:$0xff]
    %v1224 = vld [vmem:[#allocation10 + $0x30] sm:$0xff]
    %v1225 = vld [vmem:[#allocation10 + $0x38] sm:$0xff]
    %v1226 = vld [vmem:[#allocation10 + $0x40] sm:$0xff]
    %v1227 = vld [vmem:[#allocation10 + $0x48] sm:$0xff]
    %v1228 = vld [vmem:[#allocation10 + $0x50] sm:$0xff]
    %v1229 = vld [vmem:[#allocation10 + $0x58] sm:$0xff]
    %v1230 = vld [vmem:[#allocation10 + $0x60] sm:$0xff]
    %v1231 = vld [vmem:[#allocation10 + $0x68] sm:$0xff]
    %v1232 = vld [vmem:[#allocation10 + $0x70] sm:$0xff]
    %v1233 = vld [vmem:[#allocation10 + $0x78] sm:$0xff]
    %v1234 = vld [vmem:[#allocation10 + $0x80] sm:$0xff]
    %v1235 = vld [vmem:[#allocation10 + $0x88] sm:$0xff]
    %v1236 = vld [vmem:[#allocation10 + $0x90] sm:$0xff]
    %v1237 = vld [vmem:[#allocation10 + $0x98] sm:$0xff]
    %v1238 = vld [vmem:[#allocation10 + $0xa0] sm:$0xff]
    %v1239 = vld [vmem:[#allocation10 + $0xa8] sm:$0xff]
    %v1240 = vld [vmem:[#allocation10 + $0xb0] sm:$0xff]
    %v1241 = vld [vmem:[#allocation10 + $0xb8] sm:$0xff]
    %v1242 = vld [vmem:[#allocation10 + $0xc0] sm:$0xff]
    %v1243 = vld [vmem:[#allocation10 + $0xc8] sm:$0xff]
    %v1244 = vld [vmem:[#allocation10 + $0xd0] sm:$0xff]
    %v1245 = vld [vmem:[#allocation10 + $0xd8] sm:$0xff]
    %v1246 = vld [vmem:[#allocation10 + $0xe0] sm:$0xff]
    %v1247 = vld [vmem:[#allocation10 + $0xe8] sm:$0xff]
    %v1248 = vld [vmem:[#allocation10 + $0xf0] sm:$0xff]
    %v1249 = vld [vmem:[#allocation10 + $0xf8] sm:$0xff]
    %v1250 = vld [vmem:[#allocation10 + $0x100] sm:$0xff]
    %v1251 = vld [vmem:[#allocation10 + $0x108] sm:$0xff]
    %v1252 = vld [vmem:[#allocation10 + $0x110] sm:$0xff]
    %v1253 = vld [vmem:[#allocation10 + $0x118] sm:$0xff]
    %v1254 = vld [vmem:[#allocation10 + $0x120] sm:$0xff]
    %v1255 = vld [vmem:[#allocation10 + $0x128] sm:$0xff]
    %v1256 = vld [vmem:[#allocation10 + $0x130] sm:$0xff]
    %v1257 = vld [vmem:[#allocation10 + $0x138] sm:$0xff]
    %v1258 = vld [vmem:[#allocation10 + $0x140] sm:$0xff]
    %v1259 = vld [vmem:[#allocation10 + $0x148] sm:$0xff]
    %v1260 = vld [vmem:[#allocation10 + $0x150] sm:$0xff]
    %v1261 = vld [vmem:[#allocation10 + $0x158] sm:$0xff]
    %v1262 = vld [vmem:[#allocation10 + $0x160] sm:$0xff]
    %v1263 = vld [vmem:[#allocation10 + $0x168] sm:$0xff]
    %v1264 = vld [vmem:[#allocation10 + $0x170] sm:$0xff]
    %v1265 = vld [vmem:[#allocation10 + $0x178] sm:$0xff]
    %v1314 = vunpack.c.l.b16 %v1218
    %v1315 = vunpack.c.h.b16 %v1218
    %v1316 = vunpack.c.l.b16 %v1219
    %v1317 = vunpack.c.h.b16 %v1219
    %v1318 = vunpack.c.l.b16 %v1220
    %v1319 = vunpack.c.h.b16 %v1220
    %v1320 = vunpack.c.l.b16 %v1221
    %v1321 = vunpack.c.h.b16 %v1221
    %v1322 = vunpack.c.l.b16 %v1222
    %v1323 = vunpack.c.h.b16 %v1222
    %v1324 = vunpack.c.l.b16 %v1223
    %v1325 = vunpack.c.h.b16 %v1223
    %v1326 = vunpack.c.l.b16 %v1224
    %v1327 = vunpack.c.h.b16 %v1224
    %v1328 = vunpack.c.l.b16 %v1225
    %v1329 = vunpack.c.h.b16 %v1225
    %v1330 = vunpack.c.l.b16 %v1226
    %v1331 = vunpack.c.h.b16 %v1226
    %v1332 = vunpack.c.l.b16 %v1227
    %v1333 = vunpack.c.h.b16 %v1227
    %v1334 = vunpack.c.l.b16 %v1228
    %v1335 = vunpack.c.h.b16 %v1228
    %v1336 = vunpack.c.l.b16 %v1229
    %v1337 = vunpack.c.h.b16 %v1229
    %v1338 = vunpack.c.l.b16 %v1230
    %v1339 = vunpack.c.h.b16 %v1230
    %v1340 = vunpack.c.l.b16 %v1231
    %v1341 = vunpack.c.h.b16 %v1231
    %v1342 = vunpack.c.l.b16 %v1232
    %v1343 = vunpack.c.h.b16 %v1232
    %v1344 = vunpack.c.l.b16 %v1233
    %v1345 = vunpack.c.h.b16 %v1233
    %v1346 = vunpack.c.l.b16 %v1234
    %v1347 = vunpack.c.h.b16 %v1234
    %v1348 = vunpack.c.l.b16 %v1235
    %v1349 = vunpack.c.h.b16 %v1235
    %v1350 = vunpack.c.l.b16 %v1236
    %v1351 = vunpack.c.h.b16 %v1236
    %v1352 = vunpack.c.l.b16 %v1237
    %v1353 = vunpack.c.h.b16 %v1237
    %v1354 = vunpack.c.l.b16 %v1238
    %v1355 = vunpack.c.h.b16 %v1238
    %v1356 = vunpack.c.l.b16 %v1239
    %v1357 = vunpack.c.h.b16 %v1239
    %v1358 = vunpack.c.l.b16 %v1240
    %v1359 = vunpack.c.h.b16 %v1240
    %v1360 = vunpack.c.l.b16 %v1241
    %v1361 = vunpack.c.h.b16 %v1241
    %v1362 = vunpack.c.l.b16 %v1242
    %v1363 = vunpack.c.h.b16 %v1242
    %v1364 = vunpack.c.l.b16 %v1243
    %v1365 = vunpack.c.h.b16 %v1243
    %v1366 = vunpack.c.l.b16 %v1244
    %v1367 = vunpack.c.h.b16 %v1244
    %v1368 = vunpack.c.l.b16 %v1245
    %v1369 = vunpack.c.h.b16 %v1245
    %v1370 = vunpack.c.l.b16 %v1246
    %v1371 = vunpack.c.h.b16 %v1246
    %v1372 = vunpack.c.l.b16 %v1247
    %v1373 = vunpack.c.h.b16 %v1247
    %v1374 = vunpack.c.l.b16 %v1248
    %v1375 = vunpack.c.h.b16 %v1248
    %v1376 = vunpack.c.l.b16 %v1249
    %v1377 = vunpack.c.h.b16 %v1249
    %v1378 = vunpack.c.l.b16 %v1250
    %v1379 = vunpack.c.h.b16 %v1250
    %v1380 = vunpack.c.l.b16 %v1251
    %v1381 = vunpack.c.h.b16 %v1251
    %v1382 = vunpack.c.l.b16 %v1252
    %v1383 = vunpack.c.h.b16 %v1252
    %v1384 = vunpack.c.l.b16 %v1253
    %v1385 = vunpack.c.h.b16 %v1253
    %v1386 = vunpack.c.l.b16 %v1254
    %v1387 = vunpack.c.h.b16 %v1254
    %v1388 = vunpack.c.l.b16 %v1255
    %v1389 = vunpack.c.h.b16 %v1255
    %v1390 = vunpack.c.l.b16 %v1256
    %v1391 = vunpack.c.h.b16 %v1256
    %v1392 = vunpack.c.l.b16 %v1257
    %v1393 = vunpack.c.h.b16 %v1257
    %v1394 = vunpack.c.l.b16 %v1258
    %v1395 = vunpack.c.h.b16 %v1258
    %v1396 = vunpack.c.l.b16 %v1259
    %v1397 = vunpack.c.h.b16 %v1259
    %v1398 = vunpack.c.l.b16 %v1260
    %v1399 = vunpack.c.h.b16 %v1260
    %v1400 = vunpack.c.l.b16 %v1261
    %v1401 = vunpack.c.h.b16 %v1261
    %v1402 = vunpack.c.l.b16 %v1262
    %v1403 = vunpack.c.h.b16 %v1262
    %v1404 = vunpack.c.l.b16 %v1263
    %v1405 = vunpack.c.h.b16 %v1263
    %v1406 = vunpack.c.l.b16 %v1264
    %v1407 = vunpack.c.h.b16 %v1264
    %v1408 = vunpack.c.l.b16 %v1265
    %v1409 = vunpack.c.h.b16 %v1265
    %v1410 = vpack.c.b16 %v1316, %v1314
    %v1411 = vpack.c.b16 %v1317, %v1315
    %v1412 = vpack.c.b16 %v1320, %v1318
    %v1413 = vpack.c.b16 %v1321, %v1319
    %v1414 = vpack.c.b16 %v1324, %v1322
    %v1415 = vpack.c.b16 %v1325, %v1323
    %v1416 = vpack.c.b16 %v1328, %v1326
    %v1417 = vpack.c.b16 %v1329, %v1327
    %v1418 = vpack.c.b16 %v1332, %v1330
    %v1419 = vpack.c.b16 %v1333, %v1331
    %v1420 = vpack.c.b16 %v1336, %v1334
    %v1421 = vpack.c.b16 %v1337, %v1335
    %v1422 = vpack.c.b16 %v1340, %v1338
    %v1423 = vpack.c.b16 %v1341, %v1339
    %v1424 = vpack.c.b16 %v1344, %v1342
    %v1425 = vpack.c.b16 %v1345, %v1343
    %v1426 = vpack.c.b16 %v1348, %v1346
    %v1427 = vpack.c.b16 %v1349, %v1347
    %v1428 = vpack.c.b16 %v1352, %v1350
    %v1429 = vpack.c.b16 %v1353, %v1351
    %v1430 = vpack.c.b16 %v1356, %v1354
    %v1431 = vpack.c.b16 %v1357, %v1355
    %v1432 = vpack.c.b16 %v1360, %v1358
    %v1433 = vpack.c.b16 %v1361, %v1359
    %v1434 = vpack.c.b16 %v1364, %v1362
    %v1435 = vpack.c.b16 %v1365, %v1363
    %v1436 = vpack.c.b16 %v1368, %v1366
    %v1437 = vpack.c.b16 %v1369, %v1367
    %v1438 = vpack.c.b16 %v1372, %v1370
    %v1439 = vpack.c.b16 %v1373, %v1371
    %v1440 = vpack.c.b16 %v1376, %v1374
    %v1441 = vpack.c.b16 %v1377, %v1375
    %v1442 = vpack.c.b16 %v1380, %v1378
    %v1443 = vpack.c.b16 %v1381, %v1379
    %v1444 = vpack.c.b16 %v1384, %v1382
    %v1445 = vpack.c.b16 %v1385, %v1383
    %v1446 = vpack.c.b16 %v1388, %v1386
    %v1447 = vpack.c.b16 %v1389, %v1387
    %v1448 = vpack.c.b16 %v1392, %v1390
    %v1449 = vpack.c.b16 %v1393, %v1391
    %v1450 = vpack.c.b16 %v1396, %v1394
    %v1451 = vpack.c.b16 %v1397, %v1395
    %v1452 = vpack.c.b16 %v1400, %v1398
    %v1453 = vpack.c.b16 %v1401, %v1399
    %v1454 = vpack.c.b16 %v1404, %v1402
    %v1455 = vpack.c.b16 %v1405, %v1403
    %v1456 = vpack.c.b16 %v1408, %v1406
    %v1457 = vpack.c.b16 %v1409, %v1407
    %1506 = vmatprep.subr.bf16.mxu0 %v1425
    %1507 = vmatpush1.bf16.msra.mxu0 %v1424
    %1508 = vmatprep.subr.bf16.mxu0 %v1423
    %1509 = vmatpush1.bf16.msra.mxu0 %v1422
    %1510 = vmatprep.subr.bf16.mxu0 %v1421
    %1511 = vmatpush1.bf16.msra.mxu0 %v1420
    %1512 = vmatprep.subr.bf16.mxu0 %v1419
    %1513 = vmatpush1.bf16.msra.mxu0 %v1418
    %1514 = vmatprep.subr.bf16.mxu0 %v1417
    %1515 = vmatpush1.bf16.msra.mxu0 %v1416
    %1516 = vmatprep.subr.bf16.mxu0 %v1415
    %1517 = vmatpush1.bf16.msra.mxu0 %v1414
    %1518 = vmatprep.subr.bf16.mxu0 %v1413
    %1519 = vmatpush1.bf16.msra.mxu0 %v1412
    %1520 = vmatprep.subr.bf16.mxu0 %v1411
    %1521 = vmatpush1.bf16.msra.mxu0 %v1410
    %1522 = vmatprep.subr.bf16.mxu0 %v1441
    %1523 = vmatpush2.bf16.msra.mxu0 %v1440
    %1524 = vmatprep.subr.bf16.mxu0 %v1439
    %1525 = vmatpush2.bf16.msra.mxu0 %v1438
    %1526 = vmatprep.subr.bf16.mxu0 %v1437
    %1527 = vmatpush2.bf16.msra.mxu0 %v1436
    %1528 = vmatprep.subr.bf16.mxu0 %v1435
    %1529 = vmatpush2.bf16.msra.mxu0 %v1434
    %1530 = vmatprep.subr.bf16.mxu0 %v1433
    %1531 = vmatpush2.bf16.msra.mxu0 %v1432
    %1532 = vmatprep.subr.bf16.mxu0 %v1431
    %1533 = vmatpush2.bf16.msra.mxu0 %v1430
    %1534 = vmatprep.subr.bf16.mxu0 %v1429
    %1535 = vmatpush2.bf16.msra.mxu0 %v1428
    %1536 = vmatprep.subr.bf16.mxu0 %v1427
    %1537 = vmatpush2.bf16.msra.mxu0 %v1426
    %1538 = vmatprep.mubr.bf16.mxu0 %v1216
    %1539 = vmatmul.mubr.bf16.gmra.mxu0 %v1215
    %v1540 = vpop.f32.mrf.mxu0
    %v1541 = vadd.f32 0.0, %v1540
    %v1542 = vpop.f32.mrf.mxu0
    %v1543 = vadd.f32 0.0, %v1542
    %v1544 = vpop.f32.mrf.mxu0
    %v1545 = vpop.f32.mrf.mxu0
    %1546 = vdwg.mxu0
    %1547 = vmatprep.subr.bf16.mxu0 %v1457
    %1548 = vmatpush1.bf16.msra.mxu0 %v1456
    %1549 = vmatprep.subr.bf16.mxu0 %v1455
    %1550 = vmatpush1.bf16.msra.mxu0 %v1454
    %1551 = vmatprep.subr.bf16.mxu0 %v1453
    %1552 = vmatpush1.bf16.msra.mxu0 %v1452
    %1553 = vmatprep.subr.bf16.mxu0 %v1451
    %1554 = vmatpush1.bf16.msra.mxu0 %v1450
    %1555 = vmatprep.subr.bf16.mxu0 %v1449
    %1556 = vmatpush1.bf16.msra.mxu0 %v1448
    %1557 = vmatprep.subr.bf16.mxu0 %v1447
    %1558 = vmatpush1.bf16.msra.mxu0 %v1446
    %1559 = vmatprep.subr.bf16.mxu0 %v1445
    %1560 = vmatpush1.bf16.msra.mxu0 %v1444
    %1561 = vmatprep.subr.bf16.mxu0 %v1443
    %1562 = vmatpush1.bf16.msra.mxu0 %v1442
    %1563 = vmatprep.subr.bf16.mxu0 0
    %1564 = vmatpush2.bf16.msra.mxu0 0
    %1565 = vmatprep.subr.bf16.mxu0 0
    %1566 = vmatpush2.bf16.msra.mxu0 0
    %1567 = vmatprep.subr.bf16.mxu0 0
    %1568 = vmatpush2.bf16.msra.mxu0 0
    %1569 = vmatprep.subr.bf16.mxu0 0
    %1570 = vmatpush2.bf16.msra.mxu0 0
    %1571 = vmatprep.subr.bf16.mxu0 0
    %1572 = vmatpush2.bf16.msra.mxu0 0
    %1573 = vmatprep.subr.bf16.mxu0 0
    %1574 = vmatpush2.bf16.msra.mxu0 0
    %1575 = vmatprep.subr.bf16.mxu0 0
    %1576 = vmatpush2.bf16.msra.mxu0 0
    %1577 = vmatprep.subr.bf16.mxu0 0
    %1578 = vmatpush2.bf16.msra.mxu0 0
    %1579 = vmatprep.mubr.bf16.mxu0 0
    %1580 = vmatmul.mubr.bf16.gmra.mxu0 %v1217
    %v1581 = vpop.f32.mrf.mxu0
    %v1582 = vadd.f32 %v1541, %v1581
    %v1583 = vpop.f32.mrf.mxu0
    %v1584 = vadd.f32 %v1543, %v1583
    %v1585 = vpop.f32.mrf.mxu0
    %v1586 = vpop.f32.mrf.mxu0
    %1587 = vdwg.mxu0
    %v1588 = vpack.c.bf16 %v1582, %v1582
    %v1589 = vpack.c.bf16 %v1584, %v1584
    %v1590 = vld [vmem:[%s6] sm:$0x3]
    %v1593 = vunpack.c.l.s4 1966171168
    %v1594 = vunpack.c.0.s8 %v1593
    %v1595 = vlaneseq
    %v1596 = vshrl.u32 %v1595, 7
    %v1597 = vsub.s32 %v1594, %v1596
    %v1598 = vrot.slane %v1590, %v1597
    %v1599 = vcombine.high %v1598, %v1598
    %v1601 = vunpack.c.l.s4 1966171168
    %v1602 = vunpack.c.0.s8 %v1601
    %v1603 = vlaneseq
    %v1604 = vshrl.u32 %v1603, 7
    %v1605 = vsub.s32 %v1602, %v1604
    %v1606 = vrot.slane %v1598, %v1605
    %v1608 = vunpack.c.l.s4 1966171168
    %v1609 = vunpack.c.0.s8 %v1608
    %v1610 = vlaneseq
    %v1611 = vshrl.u32 %v1610, 7
    %v1612 = vsub.s32 %v1609, %v1611
    %v1613 = vrot.slane %v1599, %v1612
    %v1615 = vpack.i.b16 %v1606, %v1606
    %v1617 = vlaneseq
    %v1618 = vshrl.u32 %v1617, 7
    %v1619 = vsub.s32 0, %v1618
    %v1620 = vrot.slane %v1615, %v1619
    %v1622 = vpack.i.b16 %v1613, %v1613
    %v1624 = vlaneseq
    %v1625 = vshrl.u32 %v1624, 7
    %v1626 = vsub.s32 0, %v1625
    %v1627 = vrot.slane %v1622, %v1626
    %v1628 = vadd.bf16 %v1588, %v1620
    %v1629 = vadd.bf16 %v1589, %v1627
    %v1630 = vmax.bf16 %v1628, 0
    %v1631 = vmax.bf16 %v1629, 0
    %v1632 = vld [vmem:[#allocation11] sm:$0xff]
    %v1633 = vld [vmem:[#allocation11 + $0x8] sm:$0xff]
    %v1634 = vld [vmem:[#allocation11 + $0x10] sm:$0xff]
    %v1635 = vld [vmem:[#allocation11 + $0x18] sm:$0xff]
    %v1636 = vld [vmem:[#allocation11 + $0x20] sm:$0xff]
    %v1637 = vld [vmem:[#allocation11 + $0x28] sm:$0xff]
    %v1638 = vld [vmem:[#allocation11 + $0x30] sm:$0xff]
    %v1639 = vld [vmem:[#allocation11 + $0x38] sm:$0xff]
    %v1640 = vld [vmem:[#allocation11 + $0x40] sm:$0xff]
    %v1641 = vld [vmem:[#allocation11 + $0x48] sm:$0xff]
    %v1642 = vld [vmem:[#allocation11 + $0x50] sm:$0xff]
    %v1643 = vld [vmem:[#allocation11 + $0x58] sm:$0xff]
    %v1644 = vld [vmem:[#allocation11 + $0x60] sm:$0xff]
    %v1645 = vld [vmem:[#allocation11 + $0x68] sm:$0xff]
    %v1646 = vld [vmem:[#allocation11 + $0x70] sm:$0xff]
    %v1647 = vld [vmem:[#allocation11 + $0x78] sm:$0xff]
    %v1648 = vld [vmem:[#allocation11 + $0x80] sm:$0xff]
    %v1649 = vld [vmem:[#allocation11 + $0x88] sm:$0xff]
    %v1650 = vld [vmem:[#allocation11 + $0x90] sm:$0xff]
    %v1651 = vld [vmem:[#allocation11 + $0x98] sm:$0xff]
    %v1652 = vld [vmem:[#allocation11 + $0xa0] sm:$0xff]
    %v1653 = vld [vmem:[#allocation11 + $0xa8] sm:$0xff]
    %v1654 = vld [vmem:[#allocation11 + $0xb0] sm:$0xff]
    %v1655 = vld [vmem:[#allocation11 + $0xb8] sm:$0xff]
    %v1656 = vld [vmem:[#allocation11 + $0xc0] sm:$0xff]
    %v1657 = vld [vmem:[#allocation11 + $0xc8] sm:$0xff]
    %v1658 = vld [vmem:[#allocation11 + $0xd0] sm:$0xff]
    %v1659 = vld [vmem:[#allocation11 + $0xd8] sm:$0xff]
    %v1660 = vld [vmem:[#allocation11 + $0xe0] sm:$0xff]
    %v1661 = vld [vmem:[#allocation11 + $0xe8] sm:$0xff]
    %v1662 = vld [vmem:[#allocation11 + $0xf0] sm:$0xff]
    %v1663 = vld [vmem:[#allocation11 + $0xf8] sm:$0xff]
    %v1664 = vld [vmem:[%s8] sm:$0x3]
    %v1666 = vlaneseq
    %v1667 = vshrl.u32 %v1666, 7
    %v1668 = vsub.s32 0, %v1667
    %v1669 = vrot.slane %v1664, %v1668
    %v1670 = vlaneseq
    %v1671 = vshrl.u32 %v1670, 7
    %v1672 = vsub.s32 1, %v1671
    %v1673 = vrot.slane %v1664, %v1672
    %v1708 = vunpack.c.l.b16 %v1632
    %v1709 = vunpack.c.h.b16 %v1632
    %v1710 = vunpack.c.l.b16 %v1633
    %v1711 = vunpack.c.h.b16 %v1633
    %v1712 = vunpack.c.l.b16 %v1634
    %v1713 = vunpack.c.h.b16 %v1634
    %v1714 = vunpack.c.l.b16 %v1635
    %v1715 = vunpack.c.h.b16 %v1635
    %v1716 = vunpack.c.l.b16 %v1636
    %v1717 = vunpack.c.h.b16 %v1636
    %v1718 = vunpack.c.l.b16 %v1637
    %v1719 = vunpack.c.h.b16 %v1637
    %v1720 = vunpack.c.l.b16 %v1638
    %v1721 = vunpack.c.h.b16 %v1638
    %v1722 = vunpack.c.l.b16 %v1639
    %v1723 = vunpack.c.h.b16 %v1639
    %v1724 = vunpack.c.l.b16 %v1640
    %v1725 = vunpack.c.h.b16 %v1640
    %v1726 = vunpack.c.l.b16 %v1641
    %v1727 = vunpack.c.h.b16 %v1641
    %v1728 = vunpack.c.l.b16 %v1642
    %v1729 = vunpack.c.h.b16 %v1642
    %v1730 = vunpack.c.l.b16 %v1643
    %v1731 = vunpack.c.h.b16 %v1643
    %v1732 = vunpack.c.l.b16 %v1644
    %v1733 = vunpack.c.h.b16 %v1644
    %v1734 = vunpack.c.l.b16 %v1645
    %v1735 = vunpack.c.h.b16 %v1645
    %v1736 = vunpack.c.l.b16 %v1646
    %v1737 = vunpack.c.h.b16 %v1646
    %v1738 = vunpack.c.l.b16 %v1647
    %v1739 = vunpack.c.h.b16 %v1647
    %v1740 = vunpack.c.l.b16 %v1648
    %v1741 = vunpack.c.h.b16 %v1648
    %v1742 = vunpack.c.l.b16 %v1649
    %v1743 = vunpack.c.h.b16 %v1649
    %v1744 = vunpack.c.l.b16 %v1650
    %v1745 = vunpack.c.h.b16 %v1650
    %v1746 = vunpack.c.l.b16 %v1651
    %v1747 = vunpack.c.h.b16 %v1651
    %v1748 = vunpack.c.l.b16 %v1652
    %v1749 = vunpack.c.h.b16 %v1652
    %v1750 = vunpack.c.l.b16 %v1653
    %v1751 = vunpack.c.h.b16 %v1653
    %v1752 = vunpack.c.l.b16 %v1654
    %v1753 = vunpack.c.h.b16 %v1654
    %v1754 = vunpack.c.l.b16 %v1655
    %v1755 = vunpack.c.h.b16 %v1655
    %v1756 = vunpack.c.l.b16 %v1656
    %v1757 = vunpack.c.h.b16 %v1656
    %v1758 = vunpack.c.l.b16 %v1657
    %v1759 = vunpack.c.h.b16 %v1657
    %v1760 = vunpack.c.l.b16 %v1658
    %v1761 = vunpack.c.h.b16 %v1658
    %v1762 = vunpack.c.l.b16 %v1659
    %v1763 = vunpack.c.h.b16 %v1659
    %v1764 = vunpack.c.l.b16 %v1660
    %v1765 = vunpack.c.h.b16 %v1660
    %v1766 = vunpack.c.l.b16 %v1661
    %v1767 = vunpack.c.h.b16 %v1661
    %v1768 = vunpack.c.l.b16 %v1662
    %v1769 = vunpack.c.h.b16 %v1662
    %v1770 = vunpack.c.l.b16 %v1663
    %v1771 = vunpack.c.h.b16 %v1663
    %v1772 = vpack.c.b16 %v1710, %v1708
    %v1773 = vpack.c.b16 %v1711, %v1709
    %v1774 = vpack.c.b16 %v1714, %v1712
    %v1775 = vpack.c.b16 %v1715, %v1713
    %v1776 = vpack.c.b16 %v1718, %v1716
    %v1777 = vpack.c.b16 %v1719, %v1717
    %v1778 = vpack.c.b16 %v1722, %v1720
    %v1779 = vpack.c.b16 %v1723, %v1721
    %v1780 = vpack.c.b16 %v1726, %v1724
    %v1781 = vpack.c.b16 %v1727, %v1725
    %v1782 = vpack.c.b16 %v1730, %v1728
    %v1783 = vpack.c.b16 %v1731, %v1729
    %v1784 = vpack.c.b16 %v1734, %v1732
    %v1785 = vpack.c.b16 %v1735, %v1733
    %v1786 = vpack.c.b16 %v1738, %v1736
    %v1787 = vpack.c.b16 %v1739, %v1737
    %v1788 = vpack.c.b16 %v1742, %v1740
    %v1789 = vpack.c.b16 %v1743, %v1741
    %v1790 = vpack.c.b16 %v1746, %v1744
    %v1791 = vpack.c.b16 %v1747, %v1745
    %v1792 = vpack.c.b16 %v1750, %v1748
    %v1793 = vpack.c.b16 %v1751, %v1749
    %v1794 = vpack.c.b16 %v1754, %v1752
    %v1795 = vpack.c.b16 %v1755, %v1753
    %v1796 = vpack.c.b16 %v1758, %v1756
    %v1797 = vpack.c.b16 %v1759, %v1757
    %v1798 = vpack.c.b16 %v1762, %v1760
    %v1799 = vpack.c.b16 %v1763, %v1761
    %v1800 = vpack.c.b16 %v1766, %v1764
    %v1801 = vpack.c.b16 %v1767, %v1765
    %v1802 = vpack.c.b16 %v1770, %v1768
    %v1803 = vpack.c.b16 %v1771, %v1769
    %1836 = vmatprep.subr.bf16.mxu0 %v1787
    %1837 = vmatpush1.bf16.msra.mxu0 %v1786
    %1838 = vmatprep.subr.bf16.mxu0 %v1785
    %1839 = vmatpush1.bf16.msra.mxu0 %v1784
    %1840 = vmatprep.subr.bf16.mxu0 %v1783
    %1841 = vmatpush1.bf16.msra.mxu0 %v1782
    %1842 = vmatprep.subr.bf16.mxu0 %v1781
    %1843 = vmatpush1.bf16.msra.mxu0 %v1780
    %1844 = vmatprep.subr.bf16.mxu0 %v1779
    %1845 = vmatpush1.bf16.msra.mxu0 %v1778
    %1846 = vmatprep.subr.bf16.mxu0 %v1777
    %1847 = vmatpush1.bf16.msra.mxu0 %v1776
    %1848 = vmatprep.subr.bf16.mxu0 %v1775
    %1849 = vmatpush1.bf16.msra.mxu0 %v1774
    %1850 = vmatprep.subr.bf16.mxu0 %v1773
    %1851 = vmatpush1.bf16.msra.mxu0 %v1772
    %1852 = vmatprep.subr.bf16.mxu0 %v1803
    %1853 = vmatpush2.bf16.msra.mxu0 %v1802
    %1854 = vmatprep.subr.bf16.mxu0 %v1801
    %1855 = vmatpush2.bf16.msra.mxu0 %v1800
    %1856 = vmatprep.subr.bf16.mxu0 %v1799
    %1857 = vmatpush2.bf16.msra.mxu0 %v1798
    %1858 = vmatprep.subr.bf16.mxu0 %v1797
    %1859 = vmatpush2.bf16.msra.mxu0 %v1796
    %1860 = vmatprep.subr.bf16.mxu0 %v1795
    %1861 = vmatpush2.bf16.msra.mxu0 %v1794
    %1862 = vmatprep.subr.bf16.mxu0 %v1793
    %1863 = vmatpush2.bf16.msra.mxu0 %v1792
    %1864 = vmatprep.subr.bf16.mxu0 %v1791
    %1865 = vmatpush2.bf16.msra.mxu0 %v1790
    %1866 = vmatprep.subr.bf16.mxu0 %v1789
    %1867 = vmatpush2.bf16.msra.mxu0 %v1788
    %1868 = vmatprep.mubr.bf16.mxu0 %v1631
    %1869 = vmatmul.mubr.bf16.gmra.mxu0 %v1630
    %v1870 = vpop.f32.mrf.mxu0
    %v1871 = vadd.f32 %v1669, %v1870
    %v1872 = vpop.f32.mrf.mxu0
    %v1873 = vadd.f32 %v1673, %v1872
    %v1874 = vpop.f32.mrf.mxu0
    %v1875 = vpop.f32.mrf.mxu0
    %1876 = vdwg.mxu0
    %v1877 = vmax.f32 %v1871, 0.0
    %v1878 = vmax.f32 %v1873, 0.0
    %v1879 = vpack.c.bf16 %v1877, %v1877
    %v1880 = vpack.c.bf16 %v1878, %v1878
    %v1883 = vunpack.c.l.b16 %v1879
    %v1884 = vunpack.c.l.b16 %v1880
    %v1885 = vpack.c.b16 %v1884, %v1883
    %1887 = vst [vmem:[#allocation13] sm:$0xff] %v1885
    // Predicated region
    $region62: #{tpu_custom_call.1} parent=1 // pred_check
      _
    $region63: #{tpu_custom_call.1} parent=1 // pred_check_branch
      %1889 = sbr.rel (0) target = $region65
    $region64: #{tpu_custom_call.1} parent=1 // pred_region
      %s1891 = ssub.s32 128, 128
      %1892 = vsyncadd [#allocation4], %s1891
      %s1894 = sshll.u32 [#allocation13], 4
      %s1895 = int_to_ptr.vmem [resolvable:$true] %s1894
      %1897 = dma.vmem_to_hbm [thread:$0]  %s1895, 128, %s9, [#allocation4]
    $region65: #{tpu_custom_call.1} parent=1 // pred_fallthru
      _
    // Predicated region
    $region66: #{tpu_custom_call.1} parent=1 // pred_check
      _
    $region67: #{tpu_custom_call.1} parent=1 // pred_check_branch
      %1899 = sbr.rel (0) target = $region69
    $region68: #{tpu_custom_call.1} parent=1 // pred_region
      %1900 = dma.done [#allocation4], 128
    $region69: #{tpu_custom_call.1} parent=1 // pred_fallthru
      _
    %1901 = vsyncpa [#allocation3], 1
    %1902 = vsyncpa [#allocation6], 1
    %1903 = vsyncpa [#allocation9], 1
    %1904 = vsyncpa [#allocation12], 1
    %1905 = vsyncpa [#allocation4], 1

</llo_original>
